<compile_context>
chip_gen: v7x
topology: tpu7x:2x2x1
jax: 0.10.0
libtpu: 0.0.40
codegen_flags: <defaults>
</compile_context>

<pallas_src>
import jax
import jax.numpy as jnp
from jax.experimental import pallas as pl
from jax.experimental.pallas import tpu as pltpu

SUBLANE = 8


def _round_up(n, m):
    return (n + m - 1) // m * m


def _cdiv(a, b):
    return -(-a // b)


# ----------------------------------------------------------------------------
# Kernel
# ----------------------------------------------------------------------------
def _make_fused_decoder_kernel(num_blocks, dims, compute_dtype):
    """dims = [din_0, din_1, ..., dout_last]; static temb column offsets."""
    n = num_blocks
    offs = []
    o = 0
    for i in range(n):
        offs.append(o)
        o += dims[i]

    def kernel(*refs):
        # refs = [t, skip_0..skip_{n-1}, x, wt_cat, bt_cat,
        #         (w1_skip, w1_x, b1, w2, b2) * n, out]
        t_ref = refs[0]
        skip_refs = refs[1:1 + n]
        x_ref = refs[1 + n]
        wt_cat_ref = refs[2 + n]
        bt_cat_ref = refs[3 + n]
        w_refs = refs[4 + n:4 + n + 5 * n]
        out_ref = refs[-1]

        cdt = compute_dtype

        # One wide MXU dot covering every block's temb projection.
        # ReLU is elementwise, so ReLU of the concatenated projection equals
        # the concat of per-block ReLUs.
        t = t_ref[...].astype(cdt)
        temb_all = jnp.maximum(
            jnp.dot(t, wt_cat_ref[...], preferred_element_type=jnp.float32)
            + bt_cat_ref[...],
            0.0)

        h = x_ref[...].astype(cdt)          # activation stays resident
        h_f32 = None
        for i in range(n):
            w1s, w1x, b1, w2, b2 = w_refs[5 * i:5 * i + 5]
            skip = skip_refs[i][...].astype(cdt)
            # layer1: ReLU(cat(skip, x) @ W1 + b1) as two accumulated dots
            # (no concat temporary).
            a = (jnp.dot(skip, w1s[...], preferred_element_type=jnp.float32)
                 + jnp.dot(h, w1x[...], preferred_element_type=jnp.float32)
                 + b1[...])
            a = jnp.maximum(a, 0.0)
            # + ReLU(t @ Wt + bt): slice this block's columns (static offsets).
            a = a + temb_all[:, offs[i]:offs[i] + dims[i]]
            # layer2: ReLU(a @ W2 + b2).  Intentional cast of the f32
            # accumulator to the compute dtype before the next MXU pass.
            o2 = jnp.dot(a.astype(cdt), w2[...],
                         preferred_element_type=jnp.float32) + b2[...]
            h_f32 = jnp.maximum(o2, 0.0)
            h = h_f32.astype(cdt)           # only used if there is a next block

        # Final activation written from the f32 accumulator (no extra bf16
        # round-trip on the output).
        out_ref[...] = h_f32.astype(out_ref.dtype)

    return kernel


# ----------------------------------------------------------------------------
# One-time parameter preparation (hoisted out of the hot path)
# ----------------------------------------------------------------------------
def prepare_decoder_params(params, tdim, compute_dtype=jnp.bfloat16):
    """Build kernel-ready weight arrays ONCE at init.

    params: per block (w1[2*din, din], b1[1, din], wt[tdim, din], bt[1, din],
      w2[din, dout], b2[1, dout]) in [in, out] layout (i.e. torch W.T).
    compute_dtype: MXU input dtype (bf16 default for v6e/v7x; use jnp.float32
      for exact parity with an f32 reference).  Accumulation/biases stay f32.
    """
    num_blocks = len(params)
    assert num_blocks >= 1
    dims = [params[0][0].shape[0] // 2] + [p[4].shape[1] for p in params]

    # Fused temb projection weights: [Wt_0 | Wt_1 | ...] along the out axis.
    wt_cat = jnp.concatenate([p[2] for p in params], axis=1).astype(compute_dtype)
    bt_cat = jnp.concatenate([p[3] for p in params], axis=1).astype(jnp.float32)

    weights = [wt_cat, bt_cat]
    for i, (w1, b1, wt, bt, w2, b2) in enumerate(params):
        din = dims[i]
        weights += [
            w1[:din].astype(compute_dtype),   # W1 rows hit by the skip half
            w1[din:].astype(compute_dtype),   # W1 rows hit by the x half
            b1.astype(jnp.float32),
            w2.astype(compute_dtype),
            b2.astype(jnp.float32),
        ]

    return {
        "compute_dtype": compute_dtype,
        "dims": dims,
        "tdim": int(tdim),
        "num_blocks": num_blocks,
        "weights": tuple(jax.device_put(w) for w in weights),
    }


# ----------------------------------------------------------------------------
# Hot-path forward
# ----------------------------------------------------------------------------
def decoder_forward(skip_connections, x, t, prepared, *, batch_tile=1024):
    """Fused Decoder.forward.

    skip_connections: list, consumed in reverse order (block i uses
      reversed(skip_connections)[i], shape [B, dims[i]]).
    x: [B, dims[0]]; t: [B, tdim].
    prepared: output of prepare_decoder_params (weights already padded/cast).
    """
    dims = prepared["dims"]
    tdim = prepared["tdim"]
    num_blocks = prepared["num_blocks"]
    cdt = prepared["compute_dtype"]
    weights = prepared["weights"]
    assert len(skip_connections) == num_blocks

    out_dtype = x.dtype
    B = x.shape[0]

    # Batch tiling: always >= 2 "parallel" grid steps so v7x's second
    # TensorCore gets work; tile rounded to sublane granularity; default tile
    # of 1024 amortizes per-step overhead (~0.35 us) with tiny VMEM cost.
    Bp0 = _round_up(B, SUBLANE)
    n_steps = max(2, _cdiv(Bp0, batch_tile))
    tb = _round_up(_cdiv(Bp0, n_steps), SUBLANE)
    Bp = n_steps * tb

    def pad_rows(a):
        return a if a.shape[0] == Bp else jnp.pad(a, ((0, Bp - a.shape[0]), (0, 0)))

    t_p = pad_rows(t)
    x_p = pad_rows(x)
    skips_p = [pad_rows(s) for s in reversed(skip_connections)]

    batch_map = lambda g: (g, 0)
    const_map = lambda g: (0, 0)   # weights: DMA'd once, resident across steps

    in_specs = (
        [pl.BlockSpec((tb, tdim), batch_map)]
        + [pl.BlockSpec((tb, dims[i]), batch_map) for i in range(num_blocks)]
        + [pl.BlockSpec((tb, dims[0]), batch_map)]
        + [pl.BlockSpec(w.shape, const_map) for w in weights]
    )
    out_spec = pl.BlockSpec((tb, dims[-1]), batch_map)

    # Explicit VMEM budget (v7x only has 64 MiB physical VMEM): streamed tiles
    # are double-buffered, weights resident.  Clamp to [32, 48] MiB.
    stream_cols = tdim + sum(dims[:num_blocks]) + dims[0] + dims[-1]
    stream_bytes = 2 * tb * stream_cols * 4
    weight_bytes = 2 * sum(int(w.size) * jnp.dtype(w.dtype).itemsize for w in weights)
    vmem_limit = int(max(32 << 20, min(48 << 20, 4 * (stream_bytes + weight_bytes))))

    out_padded = pl.pallas_call(
        _make_fused_decoder_kernel(num_blocks, dims, cdt),
        out_shape=jax.ShapeDtypeStruct((Bp, dims[-1]), out_dtype),
        grid=(n_steps,),
        in_specs=in_specs,
        out_specs=out_spec,
        compiler_params=pltpu.CompilerParams(
            dimension_semantics=("parallel",),
            vmem_limit_bytes=vmem_limit,
        ),
    )(t_p, *skips_p, x_p, *weights)

    return out_padded[:B] if Bp != B else out_padded


# ----------------------------------------------------------------------------
# Synthetic params + pure-JAX reference
# ----------------------------------------------------------------------------
def init_decoder_params(key, decoder_dim, tdim):
    """Deterministic synthetic params. Weights stored [in, out] (torch W.T),
    biases [1, out]."""
    params = []
    for i in range(len(decoder_dim) - 1):
        din, dout = decoder_dim[i], decoder_dim[i + 1]
        key, *ks = jax.random.split(key, 7)
        s1 = 1.0 / jnp.sqrt(2.0 * din)
        st = 1.0 / jnp.sqrt(1.0 * tdim)
        s2 = 1.0 / jnp.sqrt(1.0 * din)
        params.append((
            jax.random.normal(ks[0], (2 * din, din), jnp.float32) * s1,  # W1
            jax.random.normal(ks[1], (1, din), jnp.float32) * s1,        # b1
            jax.random.normal(ks[2], (tdim, din), jnp.float32) * st,     # Wt
            jax.random.normal(ks[3], (1, din), jnp.float32) * st,        # bt
            jax.random.normal(ks[4], (din, dout), jnp.float32) * s2,     # W2
            jax.random.normal(ks[5], (1, dout), jnp.float32) * s2,       # b2
        ))
    return params


def _reference_forward(skip_connections, x, t, params):
    """Pure-JAX reference (matches torch Decoder.forward semantics)."""
    for skip, (w1, b1, wt, bt, w2, b2) in zip(reversed(skip_connections), params):
        h = jnp.maximum(jnp.concatenate([skip, x], axis=1) @ w1 + b1, 0.0)
        h = h + jnp.maximum(t @ wt + bt, 0.0)
        x = jnp.maximum(h @ w2 + b2, 0.0)
    return x


if __name__ == "__main__":
    key = jax.random.PRNGKey(0)
    decoder_dim = [32, 32, 16]   # 2 decoding blocks: 32->32, 32->16
    tdim = 16
    B = 8

    k0, k1, k2, k3, kp = jax.random.split(key, 5)
    # skip_connections are consumed in reverse order; block i has dim_in = decoder_dim[i]
    skip_connections = [
        jax.random.normal(k0, (B, decoder_dim[1]), jnp.float32),  # used by block 1
        jax.random.normal(k1, (B, decoder_dim[0]), jnp.float32),  # used by block 0
    ]
    x = jax.random.normal(k2, (B, decoder_dim[0]), jnp.float32)
    t = jax.random.normal(k3, (B, tdim), jnp.float32)

    params = init_decoder_params(kp, decoder_dim, tdim)
    ref = _reference_forward(skip_connections, x, t, params)

    # f32 compute path: exact parity with the reference.
    prepared_f32 = prepare_decoder_params(params, tdim, compute_dtype=jnp.float32)
    out = jax.block_until_ready(decoder_forward(skip_connections, x, t, prepared_f32))
    assert out.shape == (B, decoder_dim[-1])
    assert jnp.allclose(out, ref, atol=1e-5, rtol=1e-5)

    # bf16 compute path (default, MXU-native on v6e/v7x): looser tolerance —
    # documented precision trade-off, f32 accumulation/biases retained.
    prepared_bf16 = prepare_decoder_params(params, tdim)
    out_bf = jax.block_until_ready(decoder_forward(skip_connections, x, t, prepared_bf16))
    assert out_bf.shape == (B, decoder_dim[-1])
    assert jnp.allclose(out_bf.astype(jnp.float32), ref, atol=1e-1, rtol=1e-1)

    print("KERNEL_OK")
</pallas_src>

<mosaic_0001>
module attributes {stable_mosaic.version = 11 : i64} {
  func.func @kernel(%arg0: i32, %arg1: memref<8x16xf32, #tpu.memory_space<vmem>>, %arg2: memref<8x32xf32, #tpu.memory_space<vmem>>, %arg3: memref<8x32xf32, #tpu.memory_space<vmem>>, %arg4: memref<8x32xf32, #tpu.memory_space<vmem>>, %arg5: memref<16x64xf32, #tpu.memory_space<vmem>>, %arg6: memref<1x64xf32, #tpu.memory_space<vmem>>, %arg7: memref<32x32xf32, #tpu.memory_space<vmem>>, %arg8: memref<32x32xf32, #tpu.memory_space<vmem>>, %arg9: memref<1x32xf32, #tpu.memory_space<vmem>>, %arg10: memref<32x32xf32, #tpu.memory_space<vmem>>, %arg11: memref<1x32xf32, #tpu.memory_space<vmem>>, %arg12: memref<32x32xf32, #tpu.memory_space<vmem>>, %arg13: memref<32x32xf32, #tpu.memory_space<vmem>>, %arg14: memref<1x32xf32, #tpu.memory_space<vmem>>, %arg15: memref<32x16xf32, #tpu.memory_space<vmem>>, %arg16: memref<1x16xf32, #tpu.memory_space<vmem>>, %arg17: memref<8x16xf32, #tpu.memory_space<vmem>>) attributes {dimension_semantics = [#tpu.dimension_semantics<parallel>], iteration_bounds = array<i64: 2>, scalar_prefetch = 0 : i64, scratch_operands = 0 : i64, tpu.core_type = #tpu.core_type<tc>, window_params = [{transform_indices = @transform_0, window_bounds = array<i64: 8, 16>}, {transform_indices = @transform_1, window_bounds = array<i64: 8, 32>}, {transform_indices = @transform_2, window_bounds = array<i64: 8, 32>}, {transform_indices = @transform_3, window_bounds = array<i64: 8, 32>}, {pipeline_mode = #tpu.pipeline_mode<synchronous>, transform_indices = @transform_4, window_bounds = array<i64: 16, 64>}, {pipeline_mode = #tpu.pipeline_mode<synchronous>, transform_indices = @transform_5, window_bounds = array<i64: 1, 64>}, {pipeline_mode = #tpu.pipeline_mode<synchronous>, transform_indices = @transform_6, window_bounds = array<i64: 32, 32>}, {pipeline_mode = #tpu.pipeline_mode<synchronous>, transform_indices = @transform_7, window_bounds = array<i64: 32, 32>}, {pipeline_mode = #tpu.pipeline_mode<synchronous>, transform_indices = @transform_8, window_bounds = array<i64: 1, 32>}, {pipeline_mode = #tpu.pipeline_mode<synchronous>, transform_indices = @transform_9, window_bounds = array<i64: 32, 32>}, {pipeline_mode = #tpu.pipeline_mode<synchronous>, transform_indices = @transform_10, window_bounds = array<i64: 1, 32>}, {pipeline_mode = #tpu.pipeline_mode<synchronous>, transform_indices = @transform_11, window_bounds = array<i64: 32, 32>}, {pipeline_mode = #tpu.pipeline_mode<synchronous>, transform_indices = @transform_12, window_bounds = array<i64: 32, 32>}, {pipeline_mode = #tpu.pipeline_mode<synchronous>, transform_indices = @transform_13, window_bounds = array<i64: 1, 32>}, {pipeline_mode = #tpu.pipeline_mode<synchronous>, transform_indices = @transform_14, window_bounds = array<i64: 32, 16>}, {pipeline_mode = #tpu.pipeline_mode<synchronous>, transform_indices = @transform_15, window_bounds = array<i64: 1, 16>}, {transform_indices = @transform_16, window_bounds = array<i64: 8, 16>}]} {
    %c0 = arith.constant 0 : index
    %c0_0 = arith.constant 0 : index
    %0 = vector.load %arg1[%c0, %c0_0] : memref<8x16xf32, #tpu.memory_space<vmem>>, vector<8x16xf32>
    %c0_1 = arith.constant 0 : index
    %c0_2 = arith.constant 0 : index
    %1 = vector.load %arg5[%c0_1, %c0_2] : memref<16x64xf32, #tpu.memory_space<vmem>>, vector<16x64xf32>
    %cst = arith.constant dense<0.000000e+00> : vector<8x64xf32>
    %2 = tpu.matmul %0, %1, %cst {dimension_numbers = #tpu.dot_dimension_numbers<[1], [0], [0], [1], [0, 0, 1, 1], [], []>} : vector<8x16xf32>, vector<16x64xf32>, vector<8x64xf32> -> vector<8x64xf32>
    %c0_3 = arith.constant 0 : index
    %c0_4 = arith.constant 0 : index
    %3 = vector.load %arg6[%c0_3, %c0_4] : memref<1x64xf32, #tpu.memory_space<vmem>>, vector<1x64xf32>
    %4 = vector.broadcast %3 : vector<1x64xf32> to vector<8x64xf32>
    %5 = arith.addf %2, %4 : vector<8x64xf32>
    %cst_5 = arith.constant 0.000000e+00 : f32
    %6 = vector.broadcast %cst_5 : f32 to vector<8x64xf32>
    %7 = arith.maximumf %5, %6 : vector<8x64xf32>
    %c0_6 = arith.constant 0 : index
    %c0_7 = arith.constant 0 : index
    %8 = vector.load %arg4[%c0_6, %c0_7] : memref<8x32xf32, #tpu.memory_space<vmem>>, vector<8x32xf32>
    %c0_8 = arith.constant 0 : index
    %c0_9 = arith.constant 0 : index
    %9 = vector.load %arg2[%c0_8, %c0_9] : memref<8x32xf32, #tpu.memory_space<vmem>>, vector<8x32xf32>
    %c0_10 = arith.constant 0 : index
    %c0_11 = arith.constant 0 : index
    %10 = vector.load %arg7[%c0_10, %c0_11] : memref<32x32xf32, #tpu.memory_space<vmem>>, vector<32x32xf32>
    %cst_12 = arith.constant dense<0.000000e+00> : vector<8x32xf32>
    %11 = tpu.matmul %9, %10, %cst_12 {dimension_numbers = #tpu.dot_dimension_numbers<[1], [0], [0], [1], [0, 0, 1, 1], [], []>} : vector<8x32xf32>, vector<32x32xf32>, vector<8x32xf32> -> vector<8x32xf32>
    %c0_13 = arith.constant 0 : index
    %c0_14 = arith.constant 0 : index
    %12 = vector.load %arg8[%c0_13, %c0_14] : memref<32x32xf32, #tpu.memory_space<vmem>>, vector<32x32xf32>
    %cst_15 = arith.constant dense<0.000000e+00> : vector<8x32xf32>
    %13 = tpu.matmul %8, %12, %cst_15 {dimension_numbers = #tpu.dot_dimension_numbers<[1], [0], [0], [1], [0, 0, 1, 1], [], []>} : vector<8x32xf32>, vector<32x32xf32>, vector<8x32xf32> -> vector<8x32xf32>
    %14 = arith.addf %11, %13 : vector<8x32xf32>
    %c0_16 = arith.constant 0 : index
    %c0_17 = arith.constant 0 : index
    %15 = vector.load %arg9[%c0_16, %c0_17] : memref<1x32xf32, #tpu.memory_space<vmem>>, vector<1x32xf32>
    %16 = vector.broadcast %15 : vector<1x32xf32> to vector<8x32xf32>
    %17 = arith.addf %14, %16 : vector<8x32xf32>
    %cst_18 = arith.constant 0.000000e+00 : f32
    %18 = vector.broadcast %cst_18 : f32 to vector<8x32xf32>
    %19 = arith.maximumf %17, %18 : vector<8x32xf32>
    %20 = vector.extract_strided_slice %7 {offsets = [0, 0], sizes = [8, 32], strides = [1, 1]} : vector<8x64xf32> to vector<8x32xf32>
    %21 = arith.addf %19, %20 : vector<8x32xf32>
    %c0_19 = arith.constant 0 : index
    %c0_20 = arith.constant 0 : index
    %22 = vector.load %arg10[%c0_19, %c0_20] : memref<32x32xf32, #tpu.memory_space<vmem>>, vector<32x32xf32>
    %cst_21 = arith.constant dense<0.000000e+00> : vector<8x32xf32>
    %23 = tpu.matmul %21, %22, %cst_21 {dimension_numbers = #tpu.dot_dimension_numbers<[1], [0], [0], [1], [0, 0, 1, 1], [], []>} : vector<8x32xf32>, vector<32x32xf32>, vector<8x32xf32> -> vector<8x32xf32>
    %c0_22 = arith.constant 0 : index
    %c0_23 = arith.constant 0 : index
    %24 = vector.load %arg11[%c0_22, %c0_23] : memref<1x32xf32, #tpu.memory_space<vmem>>, vector<1x32xf32>
    %25 = vector.broadcast %24 : vector<1x32xf32> to vector<8x32xf32>
    %26 = arith.addf %23, %25 : vector<8x32xf32>
    %cst_24 = arith.constant 0.000000e+00 : f32
    %27 = vector.broadcast %cst_24 : f32 to vector<8x32xf32>
    %28 = arith.maximumf %26, %27 : vector<8x32xf32>
    %c0_25 = arith.constant 0 : index
    %c0_26 = arith.constant 0 : index
    %29 = vector.load %arg3[%c0_25, %c0_26] : memref<8x32xf32, #tpu.memory_space<vmem>>, vector<8x32xf32>
    %c0_27 = arith.constant 0 : index
    %c0_28 = arith.constant 0 : index
    %30 = vector.load %arg12[%c0_27, %c0_28] : memref<32x32xf32, #tpu.memory_space<vmem>>, vector<32x32xf32>
    %cst_29 = arith.constant dense<0.000000e+00> : vector<8x32xf32>
    %31 = tpu.matmul %29, %30, %cst_29 {dimension_numbers = #tpu.dot_dimension_numbers<[1], [0], [0], [1], [0, 0, 1, 1], [], []>} : vector<8x32xf32>, vector<32x32xf32>, vector<8x32xf32> -> vector<8x32xf32>
    %c0_30 = arith.constant 0 : index
    %c0_31 = arith.constant 0 : index
    %32 = vector.load %arg13[%c0_30, %c0_31] : memref<32x32xf32, #tpu.memory_space<vmem>>, vector<32x32xf32>
    %cst_32 = arith.constant dense<0.000000e+00> : vector<8x32xf32>
    %33 = tpu.matmul %28, %32, %cst_32 {dimension_numbers = #tpu.dot_dimension_numbers<[1], [0], [0], [1], [0, 0, 1, 1], [], []>} : vector<8x32xf32>, vector<32x32xf32>, vector<8x32xf32> -> vector<8x32xf32>
    %34 = arith.addf %31, %33 : vector<8x32xf32>
    %c0_33 = arith.constant 0 : index
    %c0_34 = arith.constant 0 : index
    %35 = vector.load %arg14[%c0_33, %c0_34] : memref<1x32xf32, #tpu.memory_space<vmem>>, vector<1x32xf32>
    %36 = vector.broadcast %35 : vector<1x32xf32> to vector<8x32xf32>
    %37 = arith.addf %34, %36 : vector<8x32xf32>
    %cst_35 = arith.constant 0.000000e+00 : f32
    %38 = vector.broadcast %cst_35 : f32 to vector<8x32xf32>
    %39 = arith.maximumf %37, %38 : vector<8x32xf32>
    %40 = vector.extract_strided_slice %7 {offsets = [0, 32], sizes = [8, 32], strides = [1, 1]} : vector<8x64xf32> to vector<8x32xf32>
    %41 = arith.addf %39, %40 : vector<8x32xf32>
    %c0_36 = arith.constant 0 : index
    %c0_37 = arith.constant 0 : index
    %42 = vector.load %arg15[%c0_36, %c0_37] : memref<32x16xf32, #tpu.memory_space<vmem>>, vector<32x16xf32>
    %cst_38 = arith.constant dense<0.000000e+00> : vector<8x16xf32>
    %43 = tpu.matmul %41, %42, %cst_38 {dimension_numbers = #tpu.dot_dimension_numbers<[1], [0], [0], [1], [0, 0, 1, 1], [], []>} : vector<8x32xf32>, vector<32x16xf32>, vector<8x16xf32> -> vector<8x16xf32>
    %c0_39 = arith.constant 0 : index
    %c0_40 = arith.constant 0 : index
    %44 = vector.load %arg16[%c0_39, %c0_40] : memref<1x16xf32, #tpu.memory_space<vmem>>, vector<1x16xf32>
    %45 = vector.broadcast %44 : vector<1x16xf32> to vector<8x16xf32>
    %46 = arith.addf %43, %45 : vector<8x16xf32>
    %cst_41 = arith.constant 0.000000e+00 : f32
    %47 = vector.broadcast %cst_41 : f32 to vector<8x16xf32>
    %48 = arith.maximumf %46, %47 : vector<8x16xf32>
    %c0_42 = arith.constant 0 : index
    %c0_43 = arith.constant 0 : index
    %49 = vector.load %arg17[%c0_42, %c0_43] : memref<8x16xf32, #tpu.memory_space<vmem>>, vector<8x16xf32>
    tpu.vector_store %arg17[%c0_42, %c0_43], %48 {strides = array<i32>} : memref<8x16xf32, #tpu.memory_space<vmem>>, vector<8x16xf32>,
    return
  }
  func.func @transform_0(%arg0: i32) -> (i32, i32) {
    %c0_i32 = arith.constant 0 : i32
    %c0_i32_0 = arith.constant 0 : i32
    return %arg0, %c0_i32 : i32, i32
  }
  func.func @transform_1(%arg0: i32) -> (i32, i32) {
    %c0_i32 = arith.constant 0 : i32
    %c0_i32_0 = arith.constant 0 : i32
    return %arg0, %c0_i32 : i32, i32
  }
  func.func @transform_2(%arg0: i32) -> (i32, i32) {
    %c0_i32 = arith.constant 0 : i32
    %c0_i32_0 = arith.constant 0 : i32
    return %arg0, %c0_i32 : i32, i32
  }
  func.func @transform_3(%arg0: i32) -> (i32, i32) {
    %c0_i32 = arith.constant 0 : i32
    %c0_i32_0 = arith.constant 0 : i32
    return %arg0, %c0_i32 : i32, i32
  }
  func.func @transform_4(%arg0: i32) -> (i32, i32) {
    %c0_i32 = arith.constant 0 : i32
    %c0_i32_0 = arith.constant 0 : i32
    %c0_i32_1 = arith.constant 0 : i32
    return %c0_i32, %c0_i32_0 : i32, i32
  }
  func.func @transform_5(%arg0: i32) -> (i32, i32) {
    %c0_i32 = arith.constant 0 : i32
    %c0_i32_0 = arith.constant 0 : i32
    %c0_i32_1 = arith.constant 0 : i32
    return %c0_i32, %c0_i32_0 : i32, i32
  }
  func.func @transform_6(%arg0: i32) -> (i32, i32) {
    %c0_i32 = arith.constant 0 : i32
    %c0_i32_0 = arith.constant 0 : i32
    %c0_i32_1 = arith.constant 0 : i32
    return %c0_i32, %c0_i32_0 : i32, i32
  }
  func.func @transform_7(%arg0: i32) -> (i32, i32) {
    %c0_i32 = arith.constant 0 : i32
    %c0_i32_0 = arith.constant 0 : i32
    %c0_i32_1 = arith.constant 0 : i32
    return %c0_i32, %c0_i32_0 : i32, i32
  }
  func.func @transform_8(%arg0: i32) -> (i32, i32) {
    %c0_i32 = arith.constant 0 : i32
    %c0_i32_0 = arith.constant 0 : i32
    %c0_i32_1 = arith.constant 0 : i32
    return %c0_i32, %c0_i32_0 : i32, i32
  }
  func.func @transform_9(%arg0: i32) -> (i32, i32) {
    %c0_i32 = arith.constant 0 : i32
    %c0_i32_0 = arith.constant 0 : i32
    %c0_i32_1 = arith.constant 0 : i32
    return %c0_i32, %c0_i32_0 : i32, i32
  }
  func.func @transform_10(%arg0: i32) -> (i32, i32) {
    %c0_i32 = arith.constant 0 : i32
    %c0_i32_0 = arith.constant 0 : i32
    %c0_i32_1 = arith.constant 0 : i32
    return %c0_i32, %c0_i32_0 : i32, i32
  }
  func.func @transform_11(%arg0: i32) -> (i32, i32) {
    %c0_i32 = arith.constant 0 : i32
    %c0_i32_0 = arith.constant 0 : i32
    %c0_i32_1 = arith.constant 0 : i32
    return %c0_i32, %c0_i32_0 : i32, i32
  }
  func.func @transform_12(%arg0: i32) -> (i32, i32) {
    %c0_i32 = arith.constant 0 : i32
    %c0_i32_0 = arith.constant 0 : i32
    %c0_i32_1 = arith.constant 0 : i32
    return %c0_i32, %c0_i32_0 : i32, i32
  }
  func.func @transform_13(%arg0: i32) -> (i32, i32) {
    %c0_i32 = arith.constant 0 : i32
    %c0_i32_0 = arith.constant 0 : i32
    %c0_i32_1 = arith.constant 0 : i32
    return %c0_i32, %c0_i32_0 : i32, i32
  }
  func.func @transform_14(%arg0: i32) -> (i32, i32) {
    %c0_i32 = arith.constant 0 : i32
    %c0_i32_0 = arith.constant 0 : i32
    %c0_i32_1 = arith.constant 0 : i32
    return %c0_i32, %c0_i32_0 : i32, i32
  }
  func.func @transform_15(%arg0: i32) -> (i32, i32) {
    %c0_i32 = arith.constant 0 : i32
    %c0_i32_0 = arith.constant 0 : i32
    %c0_i32_1 = arith.constant 0 : i32
    return %c0_i32, %c0_i32_0 : i32, i32
  }
  func.func @transform_16(%arg0: i32) -> (i32, i32) {
    %c0_i32 = arith.constant 0 : i32
    %c0_i32_0 = arith.constant 0 : i32
    return %arg0, %c0_i32 : i32, i32
  }
}

</mosaic_0001>

<llo_original>
// kernel: tpu_custom_call.1
$region0: #{tpu_custom_call.1}
  #allocation0 [shape = 'u32[]', space=smem, size = 0x4, offset = 0x4, fixed_abs, tag = 'smem constant byte address 0x4 - core index']
  #allocation1 [shape = 'u32[144,128]{1,0:T(1,128)}', space=vmem, size = 0x12000, scoped, tag = 'internal scratch']
  %s0 = inlined_call_operand.hbm [shape: f32[16,16], index: 0, kind: input, shape index: {}]
  %s1 = inlined_call_operand.hbm [shape: f32[16,32], index: 1, kind: input, shape index: {}]
  %s2 = inlined_call_operand.hbm [shape: f32[16,32], index: 2, kind: input, shape index: {}]
  %s3 = inlined_call_operand.hbm [shape: f32[16,32], index: 3, kind: input, shape index: {}]
  %s4 = inlined_call_operand.hbm [shape: f32[16,64], index: 4, kind: input, shape index: {}]
  %s5 = inlined_call_operand.vmem [shape: f32[1,64], index: 5, kind: input, shape index: {}]
  %s6 = inlined_call_operand.vmem [shape: f32[32,32], index: 6, kind: input, shape index: {}]
  %s7 = inlined_call_operand.vmem [shape: f32[32,32], index: 7, kind: input, shape index: {}]
  %s8 = inlined_call_operand.vmem [shape: f32[1,32], index: 8, kind: input, shape index: {}]
  %s9 = inlined_call_operand.hbm [shape: f32[32,32], index: 9, kind: input, shape index: {}]
  %s10 = inlined_call_operand.vmem [shape: f32[1,32], index: 10, kind: input, shape index: {}]
  %s11 = inlined_call_operand.hbm [shape: f32[32,32], index: 11, kind: input, shape index: {}]
  %s12 = inlined_call_operand.hbm [shape: f32[32,32], index: 12, kind: input, shape index: {}]
  %s13 = inlined_call_operand.vmem [shape: f32[1,32], index: 13, kind: input, shape index: {}]
  %s14 = inlined_call_operand.vmem [shape: f32[32,16], index: 14, kind: input, shape index: {}]
  %s15 = inlined_call_operand.vmem [shape: f32[1,16], index: 15, kind: input, shape index: {}]
  %s16 = inlined_call_operand.hbm [shape: f32[16,16], index: 16, kind: output, shape index: {}]
  %s17 = sld [smem:[#allocation0]]
  $region129: #{tpu_custom_call.1} parent=0
    _
  %s19 = ssub.s32 1, %s17
  %s20 = scalar_select 0, %s19, %s17
  $region1: #{tpu_custom_call.1} parent=0
    #allocation2 [shape = 'u8[8192]{0}', space=vmem, size = 0x2000, scoped, tag = 'input window, operand 0']
    #allocation3 [shape = 's32[2]{0}', space=sflag, size = 0x8, scoped, tag = 'scoped memory for tpu_custom_call.1']
    #allocation4 [shape = 's32[2]{0}', space=sflag, size = 0x8, scoped, tag = 'scoped memory for tpu_custom_call.1']
    #allocation5 [shape = 'u8[8192]{0}', space=vmem, size = 0x2000, scoped, tag = 'input window, operand 1']
    #allocation6 [shape = 's32[2]{0}', space=sflag, size = 0x8, scoped, tag = 'scoped memory for tpu_custom_call.1']
    #allocation7 [shape = 'u8[8192]{0}', space=vmem, size = 0x2000, scoped, tag = 'input window, operand 2']
    #allocation8 [shape = 'u8[8192]{0}', space=vmem, size = 0x2000, scoped, tag = 'input window, operand 3']
    #allocation9 [shape = 's32[2]{0}', space=sflag, size = 0x8, scoped, tag = 'scoped memory for tpu_custom_call.1']
    #allocation10 [shape = 'u8[8192]{0}', space=vmem, size = 0x2000, scoped, tag = 'input window, operand 4, single buffered']
    #allocation11 [shape = 'u8[16384]{0}', space=vmem, size = 0x4000, scoped, tag = 'input window, operand 9, single buffered']
    #allocation12 [shape = 's32[1]{0}', space=sflag, size = 0x4, scoped, tag = 'scoped memory for tpu_custom_call.1']
    #allocation13 [shape = 'u8[16384]{0}', space=vmem, size = 0x4000, scoped, tag = 'input window, operand 11, single buffered']
    #allocation14 [shape = 'u8[16384]{0}', space=vmem, size = 0x4000, scoped, tag = 'input window, operand 12, single buffered']
    #allocation15 [shape = 's32[1]{0}', space=sflag, size = 0x4, scoped, tag = 'scoped memory for tpu_custom_call.1']
    #allocation16 [shape = 'u8[8192]{0}', space=vmem, size = 0x2000, scoped, tag = 'output window, operand 0']
    %21 = vsyncpa [#allocation3], 0
    %s22 = scalar_lea.sflag [#allocation3], 1
    %23 = vsyncpa %s22, 0
    %24 = vsyncpa [#allocation6], 0
    %s25 = scalar_lea.sflag [#allocation6], 1
    %26 = vsyncpa %s25, 0
    %27 = vsyncpa [#allocation9], 0
    %s28 = scalar_lea.sflag [#allocation9], 1
    %29 = vsyncpa %s28, 0
    %30 = vsyncpa [#allocation12], 0
    %31 = vsyncpa [#allocation15], 0
    %32 = vsyncpa [#allocation4], 0
    %s33 = scalar_lea.sflag [#allocation4], 1
    %34 = vsyncpa %s33, 0
    loop: start=0, step=1, limit=4
    $region2: #{tpu_custom_call.1} parent=1 // loop_pre_header
      _
    $region3: #{tpu_custom_call.1} parent=1 // loop_header
      %s36 = sphi 0, %s40
      %p37 = scmp.ge.s32.totalorder %s36, 4
      %s46 = sphi 0, %s48
      %s49 = sphi 0, %s46
      %s50 = sphi 0, %s49
      %s66 = sphi 0, %s50
      %s72 = sphi 0, %s74
      %s75 = sphi 0, %s72
      %s76 = sphi 0, %s75
      %s92 = sphi 0, %s76
      %s98 = sphi 0, %s100
      %s101 = sphi 0, %s98
      %s102 = sphi 0, %s101
      %s118 = sphi 0, %s102
      %s124 = sphi 0, %s126
      %s127 = sphi 0, %s124
      %s128 = sphi 0, %s127
      %s144 = sphi 0, %s128
      %s148 = sphi 0, %s148
      %s150 = sphi 0, %s148
      %s151 = sphi 0, %s150
      %s165 = sphi 0, %s151
      %s169 = sphi 0, %s169
      %s171 = sphi 0, %s169
      %s172 = sphi 0, %s171
      %s186 = sphi 0, %s172
      %s190 = sphi 0, %s190
      %s192 = sphi 0, %s190
      %s193 = sphi 0, %s192
      %s207 = sphi 0, %s193
      %s211 = sphi 0, %s211
      %s213 = sphi 0, %s211
      %s214 = sphi 0, %s213
      %s228 = sphi 0, %s214
      %s232 = sphi 0, %s232
      %s234 = sphi 0, %s232
      %s235 = sphi 0, %s234
      %s249 = sphi 0, %s235
      %s253 = sphi 0, %s253
      %s255 = sphi 0, %s253
      %s256 = sphi 0, %s255
      %s270 = sphi 0, %s256
      %s274 = sphi 0, %s274
      %s276 = sphi 0, %s274
      %s277 = sphi 0, %s276
      %s291 = sphi 0, %s277
      %s295 = sphi 0, %s295
      %s297 = sphi 0, %s295
      %s298 = sphi 0, %s297
      %s312 = sphi 0, %s298
      %s316 = sphi 0, %s316
      %s318 = sphi 0, %s316
      %s319 = sphi 0, %s318
      %s333 = sphi 0, %s319
      %s337 = sphi 0, %s337
      %s339 = sphi 0, %s337
      %s340 = sphi 0, %s339
      %s354 = sphi 0, %s340
      %s358 = sphi 0, %s358
      %s360 = sphi 0, %s358
      %s361 = sphi 0, %s360
      %s375 = sphi 0, %s361
      %s379 = sphi 0, %s379
      %s381 = sphi 0, %s379
      %s382 = sphi 0, %s381
      %s396 = sphi 0, %s382
      %s402 = sphi 0, %s404
      %s405 = sphi 0, %s402
      %s406 = sphi 0, %s405
      %s422 = sphi 0, %s406
    $region4: #{tpu_custom_call.1} parent=1 // loop_header_branch
      %39 = sbr.rel (%p37) target = $region8
    $region5: #{tpu_custom_call.1} parent=1 // loop_body
      %s41 = ssub.s32 %s36, 1
      %s42 = ssub.s32 %s36, 2
      %s43 = sadd.s32 %s36, 1
      %s44 = ssub.s32 %s36, %s43
      %p45 = scmp.eq.s32.totalorder %s44, 0
      %s47 = sadd.s32 %s46, 1
      %s48 = scalar_select %p45, %s46, %s47
      %p51 = pneg %p45
      %p52 = scmp.eq.s32.totalorder %s36, 1
      %p53 = por %p51, %p52
      %p54 = scmp.ne.s32.totalorder %s46, %s49
      %p55 = scmp.eq.s32.totalorder %s36, 0
      %p56 = por %p54, %p55
      %p57 = scmp.ne.s32.totalorder %s46, %s49
      %p58 = scmp.eq.s32.totalorder %s41, 1
      %p59 = por %p57, %p58
      %p60 = scmp.ne.s32.totalorder %s49, %s50
      %p61 = scmp.eq.s32.totalorder %s41, 0
      %p62 = por %p60, %p61
      %p63 = scmp.ne.s32.totalorder %s49, %s50
      %p64 = scmp.eq.s32.totalorder %s42, 1
      %p65 = por %p63, %p64
      %p67 = scmp.ne.s32.totalorder %s50, %s66
      %p68 = scmp.eq.s32.totalorder %s42, 0
      %p69 = por %p67, %p68
      %s70 = ssub.s32 %s36, %s43
      %p71 = scmp.eq.s32.totalorder %s70, 0
      %s73 = sadd.s32 %s72, 1
      %s74 = scalar_select %p71, %s72, %s73
      %p77 = pneg %p71
      %p78 = scmp.eq.s32.totalorder %s36, 1
      %p79 = por %p77, %p78
      %p80 = scmp.ne.s32.totalorder %s72, %s75
      %p81 = scmp.eq.s32.totalorder %s36, 0
      %p82 = por %p80, %p81
      %p83 = scmp.ne.s32.totalorder %s72, %s75
      %p84 = scmp.eq.s32.totalorder %s41, 1
      %p85 = por %p83, %p84
      %p86 = scmp.ne.s32.totalorder %s75, %s76
      %p87 = scmp.eq.s32.totalorder %s41, 0
      %p88 = por %p86, %p87
      %p89 = scmp.ne.s32.totalorder %s75, %s76
      %p90 = scmp.eq.s32.totalorder %s42, 1
      %p91 = por %p89, %p90
      %p93 = scmp.ne.s32.totalorder %s76, %s92
      %p94 = scmp.eq.s32.totalorder %s42, 0
      %p95 = por %p93, %p94
      %s96 = ssub.s32 %s36, %s43
      %p97 = scmp.eq.s32.totalorder %s96, 0
      %s99 = sadd.s32 %s98, 1
      %s100 = scalar_select %p97, %s98, %s99
      %p103 = pneg %p97
      %p104 = scmp.eq.s32.totalorder %s36, 1
      %p105 = por %p103, %p104
      %p106 = scmp.ne.s32.totalorder %s98, %s101
      %p107 = scmp.eq.s32.totalorder %s36, 0
      %p108 = por %p106, %p107
      %p109 = scmp.ne.s32.totalorder %s98, %s101
      %p110 = scmp.eq.s32.totalorder %s41, 1
      %p111 = por %p109, %p110
      %p112 = scmp.ne.s32.totalorder %s101, %s102
      %p113 = scmp.eq.s32.totalorder %s41, 0
      %p114 = por %p112, %p113
      %p115 = scmp.ne.s32.totalorder %s101, %s102
      %p116 = scmp.eq.s32.totalorder %s42, 1
      %p117 = por %p115, %p116
      %p119 = scmp.ne.s32.totalorder %s102, %s118
      %p120 = scmp.eq.s32.totalorder %s42, 0
      %p121 = por %p119, %p120
      %s122 = ssub.s32 %s36, %s43
      %p123 = scmp.eq.s32.totalorder %s122, 0
      %s125 = sadd.s32 %s124, 1
      %s126 = scalar_select %p123, %s124, %s125
      %p129 = pneg %p123
      %p130 = scmp.eq.s32.totalorder %s36, 1
      %p131 = por %p129, %p130
      %p132 = scmp.ne.s32.totalorder %s124, %s127
      %p133 = scmp.eq.s32.totalorder %s36, 0
      %p134 = por %p132, %p133
      %p135 = scmp.ne.s32.totalorder %s124, %s127
      %p136 = scmp.eq.s32.totalorder %s41, 1
      %p137 = por %p135, %p136
      %p138 = scmp.ne.s32.totalorder %s127, %s128
      %p139 = scmp.eq.s32.totalorder %s41, 0
      %p140 = por %p138, %p139
      %p141 = scmp.ne.s32.totalorder %s127, %s128
      %p142 = scmp.eq.s32.totalorder %s42, 1
      %p143 = por %p141, %p142
      %p145 = scmp.ne.s32.totalorder %s128, %s144
      %p146 = scmp.eq.s32.totalorder %s42, 0
      %p147 = por %p145, %p146
      %s149 = sadd.s32 %s148, 1
      %p152 = scmp.eq.s32.totalorder %s36, 1
      %p153 = scmp.ne.s32.totalorder %s148, %s150
      %p154 = scmp.eq.s32.totalorder %s36, 0
      %p155 = por %p153, %p154
      %p156 = scmp.ne.s32.totalorder %s148, %s150
      %p157 = scmp.eq.s32.totalorder %s41, 1
      %p158 = por %p156, %p157
      %p159 = scmp.ne.s32.totalorder %s150, %s151
      %p160 = scmp.eq.s32.totalorder %s41, 0
      %p161 = por %p159, %p160
      %p162 = scmp.ne.s32.totalorder %s150, %s151
      %p163 = scmp.eq.s32.totalorder %s42, 1
      %p164 = por %p162, %p163
      %p166 = scmp.ne.s32.totalorder %s151, %s165
      %p167 = scmp.eq.s32.totalorder %s42, 0
      %p168 = por %p166, %p167
      %s170 = sadd.s32 %s169, 1
      %p173 = scmp.eq.s32.totalorder %s36, 1
      %p174 = scmp.ne.s32.totalorder %s169, %s171
      %p175 = scmp.eq.s32.totalorder %s36, 0
      %p176 = por %p174, %p175
      %p177 = scmp.ne.s32.totalorder %s169, %s171
      %p178 = scmp.eq.s32.totalorder %s41, 1
      %p179 = por %p177, %p178
      %p180 = scmp.ne.s32.totalorder %s171, %s172
      %p181 = scmp.eq.s32.totalorder %s41, 0
      %p182 = por %p180, %p181
      %p183 = scmp.ne.s32.totalorder %s171, %s172
      %p184 = scmp.eq.s32.totalorder %s42, 1
      %p185 = por %p183, %p184
      %p187 = scmp.ne.s32.totalorder %s172, %s186
      %p188 = scmp.eq.s32.totalorder %s42, 0
      %p189 = por %p187, %p188
      %s191 = sadd.s32 %s190, 1
      %p194 = scmp.eq.s32.totalorder %s36, 1
      %p195 = scmp.ne.s32.totalorder %s190, %s192
      %p196 = scmp.eq.s32.totalorder %s36, 0
      %p197 = por %p195, %p196
      %p198 = scmp.ne.s32.totalorder %s190, %s192
      %p199 = scmp.eq.s32.totalorder %s41, 1
      %p200 = por %p198, %p199
      %p201 = scmp.ne.s32.totalorder %s192, %s193
      %p202 = scmp.eq.s32.totalorder %s41, 0
      %p203 = por %p201, %p202
      %p204 = scmp.ne.s32.totalorder %s192, %s193
      %p205 = scmp.eq.s32.totalorder %s42, 1
      %p206 = por %p204, %p205
      %p208 = scmp.ne.s32.totalorder %s193, %s207
      %p209 = scmp.eq.s32.totalorder %s42, 0
      %p210 = por %p208, %p209
      %s212 = sadd.s32 %s211, 1
      %p215 = scmp.eq.s32.totalorder %s36, 1
      %p216 = scmp.ne.s32.totalorder %s211, %s213
      %p217 = scmp.eq.s32.totalorder %s36, 0
      %p218 = por %p216, %p217
      %p219 = scmp.ne.s32.totalorder %s211, %s213
      %p220 = scmp.eq.s32.totalorder %s41, 1
      %p221 = por %p219, %p220
      %p222 = scmp.ne.s32.totalorder %s213, %s214
      %p223 = scmp.eq.s32.totalorder %s41, 0
      %p224 = por %p222, %p223
      %p225 = scmp.ne.s32.totalorder %s213, %s214
      %p226 = scmp.eq.s32.totalorder %s42, 1
      %p227 = por %p225, %p226
      %p229 = scmp.ne.s32.totalorder %s214, %s228
      %p230 = scmp.eq.s32.totalorder %s42, 0
      %p231 = por %p229, %p230
      %s233 = sadd.s32 %s232, 1
      %p236 = scmp.eq.s32.totalorder %s36, 1
      %p237 = scmp.ne.s32.totalorder %s232, %s234
      %p238 = scmp.eq.s32.totalorder %s36, 0
      %p239 = por %p237, %p238
      %p240 = scmp.ne.s32.totalorder %s232, %s234
      %p241 = scmp.eq.s32.totalorder %s41, 1
      %p242 = por %p240, %p241
      %p243 = scmp.ne.s32.totalorder %s234, %s235
      %p244 = scmp.eq.s32.totalorder %s41, 0
      %p245 = por %p243, %p244
      %p246 = scmp.ne.s32.totalorder %s234, %s235
      %p247 = scmp.eq.s32.totalorder %s42, 1
      %p248 = por %p246, %p247
      %p250 = scmp.ne.s32.totalorder %s235, %s249
      %p251 = scmp.eq.s32.totalorder %s42, 0
      %p252 = por %p250, %p251
      %s254 = sadd.s32 %s253, 1
      %p257 = scmp.eq.s32.totalorder %s36, 1
      %p258 = scmp.ne.s32.totalorder %s253, %s255
      %p259 = scmp.eq.s32.totalorder %s36, 0
      %p260 = por %p258, %p259
      %p261 = scmp.ne.s32.totalorder %s253, %s255
      %p262 = scmp.eq.s32.totalorder %s41, 1
      %p263 = por %p261, %p262
      %p264 = scmp.ne.s32.totalorder %s255, %s256
      %p265 = scmp.eq.s32.totalorder %s41, 0
      %p266 = por %p264, %p265
      %p267 = scmp.ne.s32.totalorder %s255, %s256
      %p268 = scmp.eq.s32.totalorder %s42, 1
      %p269 = por %p267, %p268
      %p271 = scmp.ne.s32.totalorder %s256, %s270
      %p272 = scmp.eq.s32.totalorder %s42, 0
      %p273 = por %p271, %p272
      %s275 = sadd.s32 %s274, 1
      %p278 = scmp.eq.s32.totalorder %s36, 1
      %p279 = scmp.ne.s32.totalorder %s274, %s276
      %p280 = scmp.eq.s32.totalorder %s36, 0
      %p281 = por %p279, %p280
      %p282 = scmp.ne.s32.totalorder %s274, %s276
      %p283 = scmp.eq.s32.totalorder %s41, 1
      %p284 = por %p282, %p283
      %p285 = scmp.ne.s32.totalorder %s276, %s277
      %p286 = scmp.eq.s32.totalorder %s41, 0
      %p287 = por %p285, %p286
      %p288 = scmp.ne.s32.totalorder %s276, %s277
      %p289 = scmp.eq.s32.totalorder %s42, 1
      %p290 = por %p288, %p289
      %p292 = scmp.ne.s32.totalorder %s277, %s291
      %p293 = scmp.eq.s32.totalorder %s42, 0
      %p294 = por %p292, %p293
      %s296 = sadd.s32 %s295, 1
      %p299 = scmp.eq.s32.totalorder %s36, 1
      %p300 = scmp.ne.s32.totalorder %s295, %s297
      %p301 = scmp.eq.s32.totalorder %s36, 0
      %p302 = por %p300, %p301
      %p303 = scmp.ne.s32.totalorder %s295, %s297
      %p304 = scmp.eq.s32.totalorder %s41, 1
      %p305 = por %p303, %p304
      %p306 = scmp.ne.s32.totalorder %s297, %s298
      %p307 = scmp.eq.s32.totalorder %s41, 0
      %p308 = por %p306, %p307
      %p309 = scmp.ne.s32.totalorder %s297, %s298
      %p310 = scmp.eq.s32.totalorder %s42, 1
      %p311 = por %p309, %p310
      %p313 = scmp.ne.s32.totalorder %s298, %s312
      %p314 = scmp.eq.s32.totalorder %s42, 0
      %p315 = por %p313, %p314
      %s317 = sadd.s32 %s316, 1
      %p320 = scmp.eq.s32.totalorder %s36, 1
      %p321 = scmp.ne.s32.totalorder %s316, %s318
      %p322 = scmp.eq.s32.totalorder %s36, 0
      %p323 = por %p321, %p322
      %p324 = scmp.ne.s32.totalorder %s316, %s318
      %p325 = scmp.eq.s32.totalorder %s41, 1
      %p326 = por %p324, %p325
      %p327 = scmp.ne.s32.totalorder %s318, %s319
      %p328 = scmp.eq.s32.totalorder %s41, 0
      %p329 = por %p327, %p328
      %p330 = scmp.ne.s32.totalorder %s318, %s319
      %p331 = scmp.eq.s32.totalorder %s42, 1
      %p332 = por %p330, %p331
      %p334 = scmp.ne.s32.totalorder %s319, %s333
      %p335 = scmp.eq.s32.totalorder %s42, 0
      %p336 = por %p334, %p335
      %s338 = sadd.s32 %s337, 1
      %p341 = scmp.eq.s32.totalorder %s36, 1
      %p342 = scmp.ne.s32.totalorder %s337, %s339
      %p343 = scmp.eq.s32.totalorder %s36, 0
      %p344 = por %p342, %p343
      %p345 = scmp.ne.s32.totalorder %s337, %s339
      %p346 = scmp.eq.s32.totalorder %s41, 1
      %p347 = por %p345, %p346
      %p348 = scmp.ne.s32.totalorder %s339, %s340
      %p349 = scmp.eq.s32.totalorder %s41, 0
      %p350 = por %p348, %p349
      %p351 = scmp.ne.s32.totalorder %s339, %s340
      %p352 = scmp.eq.s32.totalorder %s42, 1
      %p353 = por %p351, %p352
      %p355 = scmp.ne.s32.totalorder %s340, %s354
      %p356 = scmp.eq.s32.totalorder %s42, 0
      %p357 = por %p355, %p356
      %s359 = sadd.s32 %s358, 1
      %p362 = scmp.eq.s32.totalorder %s36, 1
      %p363 = scmp.ne.s32.totalorder %s358, %s360
      %p364 = scmp.eq.s32.totalorder %s36, 0
      %p365 = por %p363, %p364
      %p366 = scmp.ne.s32.totalorder %s358, %s360
      %p367 = scmp.eq.s32.totalorder %s41, 1
      %p368 = por %p366, %p367
      %p369 = scmp.ne.s32.totalorder %s360, %s361
      %p370 = scmp.eq.s32.totalorder %s41, 0
      %p371 = por %p369, %p370
      %p372 = scmp.ne.s32.totalorder %s360, %s361
      %p373 = scmp.eq.s32.totalorder %s42, 1
      %p374 = por %p372, %p373
      %p376 = scmp.ne.s32.totalorder %s361, %s375
      %p377 = scmp.eq.s32.totalorder %s42, 0
      %p378 = por %p376, %p377
      %s380 = sadd.s32 %s379, 1
      %p383 = scmp.eq.s32.totalorder %s36, 1
      %p384 = scmp.ne.s32.totalorder %s379, %s381
      %p385 = scmp.eq.s32.totalorder %s36, 0
      %p386 = por %p384, %p385
      %p387 = scmp.ne.s32.totalorder %s379, %s381
      %p388 = scmp.eq.s32.totalorder %s41, 1
      %p389 = por %p387, %p388
      %p390 = scmp.ne.s32.totalorder %s381, %s382
      %p391 = scmp.eq.s32.totalorder %s41, 0
      %p392 = por %p390, %p391
      %p393 = scmp.ne.s32.totalorder %s381, %s382
      %p394 = scmp.eq.s32.totalorder %s42, 1
      %p395 = por %p393, %p394
      %p397 = scmp.ne.s32.totalorder %s382, %s396
      %p398 = scmp.eq.s32.totalorder %s42, 0
      %p399 = por %p397, %p398
      %s400 = ssub.s32 %s36, %s43
      %p401 = scmp.eq.s32.totalorder %s400, 0
      %s403 = sadd.s32 %s402, 1
      %s404 = scalar_select %p401, %s402, %s403
      %p407 = pneg %p401
      %p408 = scmp.eq.s32.totalorder %s36, 1
      %p409 = por %p407, %p408
      %p410 = scmp.ne.s32.totalorder %s402, %s405
      %p411 = scmp.eq.s32.totalorder %s36, 0
      %p412 = por %p410, %p411
      %p413 = scmp.ne.s32.totalorder %s402, %s405
      %p414 = scmp.eq.s32.totalorder %s41, 1
      %p415 = por %p413, %p414
      %p416 = scmp.ne.s32.totalorder %s405, %s406
      %p417 = scmp.eq.s32.totalorder %s41, 0
      %p418 = por %p416, %p417
      %p419 = scmp.ne.s32.totalorder %s405, %s406
      %p420 = scmp.eq.s32.totalorder %s42, 1
      %p421 = por %p419, %p420
      %p423 = scmp.ne.s32.totalorder %s406, %s422
      %p424 = scmp.eq.s32.totalorder %s42, 0
      %p425 = por %p423, %p424
      %p426 = scmp.le.s32.totalorder 1, %s36
      %p427 = scmp.lt.s32.totalorder %s36, 3
      %p428 = pnand %p426, %p427
      %p429 = pneg %p428
      // Predicated region
      $region9: #{tpu_custom_call.1} parent=5 // pred_check
        _
      $region10: #{tpu_custom_call.1} parent=5 // pred_check_branch
        %431 = sbr.rel (%p428) target = $region12
      $region11: #{tpu_custom_call.1} parent=5 // pred_region
        %s432 = ssub.s32 %s36, 1
        // Predicated region
        $region13: #{tpu_custom_call.1} parent=11 // pred_check
          %p433 = pneg %p161
        $region14: #{tpu_custom_call.1} parent=11 // pred_check_branch
          %435 = sbr.rel (%p433) target = $region16
        $region15: #{tpu_custom_call.1} parent=11 // pred_region
          %s437 = ssub.s32 256, 256
          %438 = vsyncadd [#allocation9], %s437
          %s439 = sshll.u32 [#allocation10], 4
          %s440 = int_to_ptr.vmem [resolvable:$true] %s439
          %445 = dma.hbm_to_vmem [thread:$0]  %s4, 256, %s440, [#allocation9], 128, 128, 8
        $region16: #{tpu_custom_call.1} parent=11 // pred_fallthru
          _
        // Predicated region
        $region17: #{tpu_custom_call.1} parent=11 // pred_check
          %p446 = pneg %p182
        $region18: #{tpu_custom_call.1} parent=11 // pred_check_branch
          %448 = sbr.rel (%p446) target = $region20
        $region19: #{tpu_custom_call.1} parent=11 // pred_region
          _
        $region20: #{tpu_custom_call.1} parent=11 // pred_fallthru
          _
        // Predicated region
        $region21: #{tpu_custom_call.1} parent=11 // pred_check
          %p449 = pneg %p203
        $region22: #{tpu_custom_call.1} parent=11 // pred_check_branch
          %451 = sbr.rel (%p449) target = $region24
        $region23: #{tpu_custom_call.1} parent=11 // pred_region
          _
        $region24: #{tpu_custom_call.1} parent=11 // pred_fallthru
          _
        // Predicated region
        $region25: #{tpu_custom_call.1} parent=11 // pred_check
          %p452 = pneg %p224
        $region26: #{tpu_custom_call.1} parent=11 // pred_check_branch
          %454 = sbr.rel (%p452) target = $region28
        $region27: #{tpu_custom_call.1} parent=11 // pred_region
          _
        $region28: #{tpu_custom_call.1} parent=11 // pred_fallthru
          _
        // Predicated region
        $region29: #{tpu_custom_call.1} parent=11 // pred_check
          %p455 = pneg %p245
        $region30: #{tpu_custom_call.1} parent=11 // pred_check_branch
          %457 = sbr.rel (%p455) target = $region32
        $region31: #{tpu_custom_call.1} parent=11 // pred_region
          _
        $region32: #{tpu_custom_call.1} parent=11 // pred_fallthru
          _
        // Predicated region
        $region33: #{tpu_custom_call.1} parent=11 // pred_check
          %p458 = pneg %p266
        $region34: #{tpu_custom_call.1} parent=11 // pred_check_branch
          %460 = sbr.rel (%p458) target = $region36
        $region35: #{tpu_custom_call.1} parent=11 // pred_region
          %s462 = ssub.s32 512, 512
          %463 = vsyncadd [#allocation12], %s462
          %s464 = sshll.u32 [#allocation11], 4
          %s465 = int_to_ptr.vmem [resolvable:$true] %s464
          %470 = dma.hbm_to_vmem [thread:$0]  %s9, 512, %s465, [#allocation12], 128, 128, 8
        $region36: #{tpu_custom_call.1} parent=11 // pred_fallthru
          _
        // Predicated region
        $region37: #{tpu_custom_call.1} parent=11 // pred_check
          %p471 = pneg %p287
        $region38: #{tpu_custom_call.1} parent=11 // pred_check_branch
          %473 = sbr.rel (%p471) target = $region40
        $region39: #{tpu_custom_call.1} parent=11 // pred_region
          _
        $region40: #{tpu_custom_call.1} parent=11 // pred_fallthru
          _
        // Predicated region
        $region41: #{tpu_custom_call.1} parent=11 // pred_check
          %p474 = pneg %p308
        $region42: #{tpu_custom_call.1} parent=11 // pred_check_branch
          %476 = sbr.rel (%p474) target = $region44
        $region43: #{tpu_custom_call.1} parent=11 // pred_region
          %s478 = ssub.s32 512, 512
          %479 = vsyncadd [#allocation12], %s478
          %s480 = sshll.u32 [#allocation13], 4
          %s481 = int_to_ptr.vmem [resolvable:$true] %s480
          %486 = dma.hbm_to_vmem [thread:$0]  %s11, 512, %s481, [#allocation12], 128, 128, 8
        $region44: #{tpu_custom_call.1} parent=11 // pred_fallthru
          _
        // Predicated region
        $region45: #{tpu_custom_call.1} parent=11 // pred_check
          %p487 = pneg %p329
        $region46: #{tpu_custom_call.1} parent=11 // pred_check_branch
          %489 = sbr.rel (%p487) target = $region48
        $region47: #{tpu_custom_call.1} parent=11 // pred_region
          %s491 = ssub.s32 512, 512
          %492 = vsyncadd [#allocation15], %s491
          %s493 = sshll.u32 [#allocation14], 4
          %s494 = int_to_ptr.vmem [resolvable:$true] %s493
          %499 = dma.hbm_to_vmem [thread:$0]  %s12, 512, %s494, [#allocation15], 128, 128, 8
        $region48: #{tpu_custom_call.1} parent=11 // pred_fallthru
          _
        // Predicated region
        $region49: #{tpu_custom_call.1} parent=11 // pred_check
          %p500 = pneg %p350
        $region50: #{tpu_custom_call.1} parent=11 // pred_check_branch
          %502 = sbr.rel (%p500) target = $region52
        $region51: #{tpu_custom_call.1} parent=11 // pred_region
          _
        $region52: #{tpu_custom_call.1} parent=11 // pred_fallthru
          _
        // Predicated region
        $region53: #{tpu_custom_call.1} parent=11 // pred_check
          %p503 = pneg %p371
        $region54: #{tpu_custom_call.1} parent=11 // pred_check_branch
          %505 = sbr.rel (%p503) target = $region56
        $region55: #{tpu_custom_call.1} parent=11 // pred_region
          _
        $region56: #{tpu_custom_call.1} parent=11 // pred_fallthru
          _
        // Predicated region
        $region57: #{tpu_custom_call.1} parent=11 // pred_check
          %p506 = pneg %p392
        $region58: #{tpu_custom_call.1} parent=11 // pred_check_branch
          %508 = sbr.rel (%p506) target = $region60
        $region59: #{tpu_custom_call.1} parent=11 // pred_region
          _
        $region60: #{tpu_custom_call.1} parent=11 // pred_fallthru
          _
      $region12: #{tpu_custom_call.1} parent=5 // pred_fallthru
        _
      %p509 = scmp.lt.s32.totalorder %s36, 2
      // Predicated region
      $region61: #{tpu_custom_call.1} parent=5 // pred_check
        %p510 = pneg %p509
      $region62: #{tpu_custom_call.1} parent=5 // pred_check_branch
        %512 = sbr.rel (%p510) target = $region64
      $region63: #{tpu_custom_call.1} parent=5 // pred_region
        // Predicated region
        $region65: #{tpu_custom_call.1} parent=63 // pred_check
          %p513 = pneg %p56
        $region66: #{tpu_custom_call.1} parent=63 // pred_check_branch
          %515 = sbr.rel (%p513) target = $region68
        $region67: #{tpu_custom_call.1} parent=63 // pred_region
          %s516 = sand.u32 %s46, 1
          %s517 = scalar_lea.sflag [#allocation3], %s516
          %s518 = sand.u32 %s46, 1
          %s519 = smul.addr %s518, 8
          %s520 = scalar_lea.vmem [#allocation2], %s519
          %s522 = ssub.s32 128, 128
          %523 = vsyncadd %s517, %s522
          %s524 = smul.addr %s36, 128
          %s525 = scalar_lea.hbm %s0, %s524
          %s527 = sshll.u32 %s520, 4
          %s528 = int_to_ptr.vmem [resolvable:$true] %s527
          %530 = dma.hbm_to_vmem [thread:$0]  %s525, 128, %s528, %s517
        $region68: #{tpu_custom_call.1} parent=63 // pred_fallthru
          _
        // Predicated region
        $region69: #{tpu_custom_call.1} parent=63 // pred_check
          %p531 = pneg %p82
        $region70: #{tpu_custom_call.1} parent=63 // pred_check_branch
          %533 = sbr.rel (%p531) target = $region72
        $region71: #{tpu_custom_call.1} parent=63 // pred_region
          %s534 = sand.u32 %s36, 1
          %s535 = scalar_lea.sflag [#allocation6], %s534
          %s536 = sand.u32 %s72, 1
          %s537 = smul.addr %s536, 8
          %s538 = scalar_lea.vmem [#allocation5], %s537
          %s540 = ssub.s32 128, 128
          %541 = vsyncadd %s535, %s540
          %s542 = smul.addr %s36, 128
          %s543 = scalar_lea.hbm %s1, %s542
          %s545 = sshll.u32 %s538, 4
          %s546 = int_to_ptr.vmem [resolvable:$true] %s545
          %548 = dma.hbm_to_vmem [thread:$0]  %s543, 128, %s546, %s535
        $region72: #{tpu_custom_call.1} parent=63 // pred_fallthru
          _
        // Predicated region
        $region73: #{tpu_custom_call.1} parent=63 // pred_check
          %p549 = pneg %p108
        $region74: #{tpu_custom_call.1} parent=63 // pred_check_branch
          %551 = sbr.rel (%p549) target = $region76
        $region75: #{tpu_custom_call.1} parent=63 // pred_region
          %s552 = sand.u32 %s36, 1
          %s553 = scalar_lea.sflag [#allocation6], %s552
          %s554 = sand.u32 %s98, 1
          %s555 = smul.addr %s554, 8
          %s556 = scalar_lea.vmem [#allocation7], %s555
          %s558 = ssub.s32 128, 128
          %559 = vsyncadd %s553, %s558
          %s560 = smul.addr %s36, 128
          %s561 = scalar_lea.hbm %s2, %s560
          %s563 = sshll.u32 %s556, 4
          %s564 = int_to_ptr.vmem [resolvable:$true] %s563
          %566 = dma.hbm_to_vmem [thread:$0]  %s561, 128, %s564, %s553
        $region76: #{tpu_custom_call.1} parent=63 // pred_fallthru
          _
        // Predicated region
        $region77: #{tpu_custom_call.1} parent=63 // pred_check
          %p567 = pneg %p134
        $region78: #{tpu_custom_call.1} parent=63 // pred_check_branch
          %569 = sbr.rel (%p567) target = $region80
        $region79: #{tpu_custom_call.1} parent=63 // pred_region
          %s570 = sand.u32 %s36, 1
          %s571 = scalar_lea.sflag [#allocation9], %s570
          %s572 = sand.u32 %s124, 1
          %s573 = smul.addr %s572, 8
          %s574 = scalar_lea.vmem [#allocation8], %s573
          %s576 = ssub.s32 128, 128
          %577 = vsyncadd %s571, %s576
          %s578 = smul.addr %s36, 128
          %s579 = scalar_lea.hbm %s3, %s578
          %s581 = sshll.u32 %s574, 4
          %s582 = int_to_ptr.vmem [resolvable:$true] %s581
          %584 = dma.hbm_to_vmem [thread:$0]  %s579, 128, %s582, %s571
        $region80: #{tpu_custom_call.1} parent=63 // pred_fallthru
          _
      $region64: #{tpu_custom_call.1} parent=5 // pred_fallthru
        _
      %p585 = scmp.le.s32.totalorder 1, %s36
      %p586 = scmp.lt.s32.totalorder %s36, 3
      %p587 = pnand %p585, %p586
      %p588 = pneg %p587
      // Predicated region
      $region81: #{tpu_custom_call.1} parent=5 // pred_check
        _
      $region82: #{tpu_custom_call.1} parent=5 // pred_check_branch
        %590 = sbr.rel (%p587) target = $region84
      $region83: #{tpu_custom_call.1} parent=5 // pred_region
        %s591 = ssub.s32 %s36, 1
        %s592 = sand.u32 %s49, 1
        %s593 = scalar_lea.sflag [#allocation3], %s592
        %s594 = sand.u32 %s49, 1
        %s595 = smul.addr %s594, 8
        %s596 = scalar_lea.vmem [#allocation2], %s595
        // Predicated region
        $region85: #{tpu_custom_call.1} parent=83 // pred_check
          %p597 = pneg %p62
        $region86: #{tpu_custom_call.1} parent=83 // pred_check_branch
          %599 = sbr.rel (%p597) target = $region88
        $region87: #{tpu_custom_call.1} parent=83 // pred_region
          %600 = dma.done %s593, 128
        $region88: #{tpu_custom_call.1} parent=83 // pred_fallthru
          _
        %s601 = sand.u32 %s41, 1
        %s602 = scalar_lea.sflag [#allocation6], %s601
        %s603 = sand.u32 %s75, 1
        %s604 = smul.addr %s603, 8
        %s605 = scalar_lea.vmem [#allocation5], %s604
        // Predicated region
        $region89: #{tpu_custom_call.1} parent=83 // pred_check
          %p606 = pneg %p88
        $region90: #{tpu_custom_call.1} parent=83 // pred_check_branch
          %608 = sbr.rel (%p606) target = $region92
        $region91: #{tpu_custom_call.1} parent=83 // pred_region
          %609 = dma.done %s602, 128
        $region92: #{tpu_custom_call.1} parent=83 // pred_fallthru
          _
        %s610 = sand.u32 %s41, 1
        %s611 = scalar_lea.sflag [#allocation6], %s610
        %s612 = sand.u32 %s101, 1
        %s613 = smul.addr %s612, 8
        %s614 = scalar_lea.vmem [#allocation7], %s613
        // Predicated region
        $region93: #{tpu_custom_call.1} parent=83 // pred_check
          %p615 = pneg %p114
        $region94: #{tpu_custom_call.1} parent=83 // pred_check_branch
          %617 = sbr.rel (%p615) target = $region96
        $region95: #{tpu_custom_call.1} parent=83 // pred_region
          %618 = dma.done %s611, 128
        $region96: #{tpu_custom_call.1} parent=83 // pred_fallthru
          _
        %s619 = sand.u32 %s41, 1
        %s620 = scalar_lea.sflag [#allocation9], %s619
        %s621 = sand.u32 %s127, 1
        %s622 = smul.addr %s621, 8
        %s623 = scalar_lea.vmem [#allocation8], %s622
        // Predicated region
        $region97: #{tpu_custom_call.1} parent=83 // pred_check
          %p624 = pneg %p140
        $region98: #{tpu_custom_call.1} parent=83 // pred_check_branch
          %626 = sbr.rel (%p624) target = $region100
        $region99: #{tpu_custom_call.1} parent=83 // pred_region
          %627 = dma.done %s620, 128
        $region100: #{tpu_custom_call.1} parent=83 // pred_fallthru
          _
        // Predicated region
        $region101: #{tpu_custom_call.1} parent=83 // pred_check
          %p628 = pneg %p161
        $region102: #{tpu_custom_call.1} parent=83 // pred_check_branch
          %630 = sbr.rel (%p628) target = $region104
        $region103: #{tpu_custom_call.1} parent=83 // pred_region
          %631 = dma.done [#allocation9], 256
        $region104: #{tpu_custom_call.1} parent=83 // pred_fallthru
          _
        // Predicated region
        $region105: #{tpu_custom_call.1} parent=83 // pred_check
          %p632 = pneg %p266
        $region106: #{tpu_custom_call.1} parent=83 // pred_check_branch
          %634 = sbr.rel (%p632) target = $region108
        $region107: #{tpu_custom_call.1} parent=83 // pred_region
          %635 = dma.done [#allocation12], 512
        $region108: #{tpu_custom_call.1} parent=83 // pred_fallthru
          _
        // Predicated region
        $region109: #{tpu_custom_call.1} parent=83 // pred_check
          %p636 = pneg %p308
        $region110: #{tpu_custom_call.1} parent=83 // pred_check_branch
          %638 = sbr.rel (%p636) target = $region112
        $region111: #{tpu_custom_call.1} parent=83 // pred_region
          %639 = dma.done [#allocation12], 512
        $region112: #{tpu_custom_call.1} parent=83 // pred_fallthru
          _
        // Predicated region
        $region113: #{tpu_custom_call.1} parent=83 // pred_check
          %p640 = pneg %p329
        $region114: #{tpu_custom_call.1} parent=83 // pred_check_branch
          %642 = sbr.rel (%p640) target = $region116
        $region115: #{tpu_custom_call.1} parent=83 // pred_region
          %643 = dma.done [#allocation15], 512
        $region116: #{tpu_custom_call.1} parent=83 // pred_fallthru
          _
        %s644 = sand.u32 %s49, 1
        %s645 = scalar_lea.sflag [#allocation3], %s644
        %s646 = sand.u32 %s49, 1
        %s647 = smul.addr %s646, 8
        %s648 = scalar_lea.vmem [#allocation2], %s647
        %p649 = pneg %p62
        %p650 = pneg %p59
        %s651 = sand.u32 %s41, 1
        %s652 = scalar_lea.sflag [#allocation6], %s651
        %s653 = sand.u32 %s75, 1
        %s654 = smul.addr %s653, 8
        %s655 = scalar_lea.vmem [#allocation5], %s654
        %p656 = pneg %p88
        %p657 = pneg %p85
        %s658 = sand.u32 %s41, 1
        %s659 = scalar_lea.sflag [#allocation6], %s658
        %s660 = sand.u32 %s101, 1
        %s661 = smul.addr %s660, 8
        %s662 = scalar_lea.vmem [#allocation7], %s661
        %p663 = pneg %p114
        %p664 = pneg %p111
        %s665 = sand.u32 %s41, 1
        %s666 = scalar_lea.sflag [#allocation9], %s665
        %s667 = sand.u32 %s127, 1
        %s668 = smul.addr %s667, 8
        %s669 = scalar_lea.vmem [#allocation8], %s668
        %p670 = pneg %p140
        %p671 = pneg %p137
        %p672 = pneg %p161
        %p673 = pneg %p158
        %p674 = pneg %p182
        %p675 = pneg %p179
        %p676 = pneg %p203
        %p677 = pneg %p200
        %p678 = pneg %p224
        %p679 = pneg %p221
        %p680 = pneg %p245
        %p681 = pneg %p242
        %p682 = pneg %p266
        %p683 = pneg %p263
        %p684 = pneg %p287
        %p685 = pneg %p284
        %p686 = pneg %p308
        %p687 = pneg %p305
        %p688 = pneg %p329
        %p689 = pneg %p326
        %p690 = pneg %p350
        %p691 = pneg %p347
        %p692 = pneg %p371
        %p693 = pneg %p368
        %p694 = pneg %p392
        %p695 = pneg %p389
        %p696 = pneg %p418
        %p697 = pneg %p415
        %s698 = sand.u32 %s405, 1
        %s699 = scalar_lea.sflag [#allocation4], %s698
        %s700 = sand.u32 %s405, 1
        %s701 = smul.addr %s700, 8
        %s702 = scalar_lea.vmem [#allocation16], %s701
        %v703 = vld [vmem:[%s596] sm:$0xff]
        %v704 = vld [vmem:[#allocation10] sm:$0xff]
        %v705 = vld [vmem:[#allocation10 + $0x8] sm:$0xff]
        %v706 = vld [vmem:[%s5] sm:$0x1]
        %v708 = vlaneseq
        %v709 = vshrl.u32 %v708, 7
        %v710 = vsub.s32 0, %v709
        %v711 = vrot.slane %v706, %v710
        %vm713 = vcmask 130048
        %v715 = vsel %vm713, %v703, 0
        %717 = vmatprep.subr.mxu0 0.0
        %718 = vmatpush1.msra.mxu0 %v704
        %719 = vmatprep.subr.mxu0 0.0
        %720 = vmatpush1.msra.mxu0 %v705
        %721 = vmatprep.subr.mxu0 0.0
        %722 = vmatpush1.msra.mxu0 0.0
        %723 = vmatprep.subr.mxu0 0.0
        %724 = vmatpush1.msra.mxu0 0.0
        %725 = vmatprep.subr.mxu0 0.0
        %726 = vmatpush1.msra.mxu0 0.0
        %727 = vmatprep.subr.mxu0 0.0
        %728 = vmatpush1.msra.mxu0 0.0
        %729 = vmatprep.subr.mxu0 0.0
        %730 = vmatpush1.msra.mxu0 0.0
        %731 = vmatprep.subr.mxu0 0.0
        %732 = vmatpush1.msra.mxu0 0.0
        %733 = vmatprep.subr.mxu0 0.0
        %734 = vmatpush1.msra.mxu0 0.0
        %735 = vmatprep.subr.mxu0 0.0
        %736 = vmatpush1.msra.mxu0 0.0
        %737 = vmatprep.subr.mxu0 0.0
        %738 = vmatpush1.msra.mxu0 0.0
        %739 = vmatprep.subr.mxu0 0.0
        %740 = vmatpush1.msra.mxu0 0.0
        %741 = vmatprep.subr.mxu0 0.0
        %742 = vmatpush1.msra.mxu0 0.0
        %743 = vmatprep.subr.mxu0 0.0
        %744 = vmatpush1.msra.mxu0 0.0
        %745 = vmatprep.subr.mxu0 0.0
        %746 = vmatpush1.msra.mxu0 0.0
        %747 = vmatprep.subr.mxu0 0.0
        %748 = vmatpush1.msra.mxu0 0.0
        %749 = vmatprep.subr.mxu0 0.0
        %750 = vmatpush1.msra.mxu0 0.0
        %751 = vmatprep.subr.mxu0 0.0
        %752 = vmatpush1.msra.mxu0 0.0
        %753 = vmatprep.subr.mxu0 0.0
        %754 = vmatpush1.msra.mxu0 0.0
        %755 = vmatprep.subr.mxu0 0.0
        %756 = vmatpush1.msra.mxu0 0.0
        %757 = vmatprep.subr.mxu0 0.0
        %758 = vmatpush1.msra.mxu0 0.0
        %759 = vmatprep.subr.mxu0 0.0
        %760 = vmatpush1.msra.mxu0 0.0
        %761 = vmatprep.subr.mxu0 0.0
        %762 = vmatpush1.msra.mxu0 0.0
        %763 = vmatprep.subr.mxu0 0.0
        %764 = vmatpush1.msra.mxu0 0.0
        %765 = vmatprep.subr.mxu0 0.0
        %766 = vmatpush1.msra.mxu0 0.0
        %767 = vmatprep.subr.mxu0 0.0
        %768 = vmatpush1.msra.mxu0 0.0
        %769 = vmatprep.subr.mxu0 0.0
        %770 = vmatpush1.msra.mxu0 0.0
        %771 = vmatprep.subr.mxu0 0.0
        %772 = vmatpush1.msra.mxu0 0.0
        %773 = vmatprep.subr.mxu0 0.0
        %774 = vmatpush1.msra.mxu0 0.0
        %775 = vmatprep.subr.mxu0 0.0
        %776 = vmatpush1.msra.mxu0 0.0
        %777 = vmatprep.subr.mxu0 0.0
        %778 = vmatpush1.msra.mxu0 0.0
        %779 = vmatprep.subr.mxu0 0.0
        %780 = vmatpush1.msra.mxu0 0.0
        %781 = vmatprep.mubr.f32.mxu0 0.0
        %782 = vmatmul.mubr.f32.gmra.mrb[0].mxu0 %v715
        %v783 = vpop.f32.mrb[0].mxu0
        %v784 = vadd.f32 %v711, %v783
        %v785 = vpop.f32.mrb[0].mxu0
        %786 = vdwg.mxu0
        %v787 = vmax.f32 %v784, 0.0
        %v788 = vld [vmem:[%s623] sm:$0xff]
        %v789 = vld [vmem:[%s605] sm:$0xff]
        %v790 = vld [vmem:[%s6] sm:$0xff]
        %v791 = vld [vmem:[%s6 + $0x8] sm:$0xff]
        %v792 = vld [vmem:[%s6 + $0x10] sm:$0xff]
        %v793 = vld [vmem:[%s6 + $0x18] sm:$0xff]
        %v794 = vld [vmem:[%s7] sm:$0xff]
        %v795 = vld [vmem:[%s7 + $0x8] sm:$0xff]
        %v796 = vld [vmem:[%s7 + $0x10] sm:$0xff]
        %v797 = vld [vmem:[%s7 + $0x18] sm:$0xff]
        %vm798 = vcmask 261120
        %v800 = vsel %vm798, %v788, 0
        %802 = vmatprep.subr.mxu0 0.0
        %803 = vmatpush1.msra.mxu0 %v794
        %804 = vmatprep.subr.mxu0 0.0
        %805 = vmatpush1.msra.mxu0 %v795
        %806 = vmatprep.subr.mxu0 0.0
        %807 = vmatpush1.msra.mxu0 %v796
        %808 = vmatprep.subr.mxu0 0.0
        %809 = vmatpush1.msra.mxu0 %v797
        %810 = vmatprep.subr.mxu0 0.0
        %811 = vmatpush1.msra.mxu0 0.0
        %812 = vmatprep.subr.mxu0 0.0
        %813 = vmatpush1.msra.mxu0 0.0
        %814 = vmatprep.subr.mxu0 0.0
        %815 = vmatpush1.msra.mxu0 0.0
        %816 = vmatprep.subr.mxu0 0.0
        %817 = vmatpush1.msra.mxu0 0.0
        %818 = vmatprep.subr.mxu0 0.0
        %819 = vmatpush1.msra.mxu0 0.0
        %820 = vmatprep.subr.mxu0 0.0
        %821 = vmatpush1.msra.mxu0 0.0
        %822 = vmatprep.subr.mxu0 0.0
        %823 = vmatpush1.msra.mxu0 0.0
        %824 = vmatprep.subr.mxu0 0.0
        %825 = vmatpush1.msra.mxu0 0.0
        %826 = vmatprep.subr.mxu0 0.0
        %827 = vmatpush1.msra.mxu0 0.0
        %828 = vmatprep.subr.mxu0 0.0
        %829 = vmatpush1.msra.mxu0 0.0
        %830 = vmatprep.subr.mxu0 0.0
        %831 = vmatpush1.msra.mxu0 0.0
        %832 = vmatprep.subr.mxu0 0.0
        %833 = vmatpush1.msra.mxu0 0.0
        %834 = vmatprep.subr.mxu0 0.0
        %835 = vmatpush1.msra.mxu0 0.0
        %836 = vmatprep.subr.mxu0 0.0
        %837 = vmatpush1.msra.mxu0 0.0
        %838 = vmatprep.subr.mxu0 0.0
        %839 = vmatpush1.msra.mxu0 0.0
        %840 = vmatprep.subr.mxu0 0.0
        %841 = vmatpush1.msra.mxu0 0.0
        %842 = vmatprep.subr.mxu0 0.0
        %843 = vmatpush1.msra.mxu0 0.0
        %844 = vmatprep.subr.mxu0 0.0
        %845 = vmatpush1.msra.mxu0 0.0
        %846 = vmatprep.subr.mxu0 0.0
        %847 = vmatpush1.msra.mxu0 0.0
        %848 = vmatprep.subr.mxu0 0.0
        %849 = vmatpush1.msra.mxu0 0.0
        %850 = vmatprep.subr.mxu0 0.0
        %851 = vmatpush1.msra.mxu0 0.0
        %852 = vmatprep.subr.mxu0 0.0
        %853 = vmatpush1.msra.mxu0 0.0
        %854 = vmatprep.subr.mxu0 0.0
        %855 = vmatpush1.msra.mxu0 0.0
        %856 = vmatprep.subr.mxu0 0.0
        %857 = vmatpush1.msra.mxu0 0.0
        %858 = vmatprep.subr.mxu0 0.0
        %859 = vmatpush1.msra.mxu0 0.0
        %860 = vmatprep.subr.mxu0 0.0
        %861 = vmatpush1.msra.mxu0 0.0
        %862 = vmatprep.subr.mxu0 0.0
        %863 = vmatpush1.msra.mxu0 0.0
        %864 = vmatprep.subr.mxu0 0.0
        %865 = vmatpush1.msra.mxu0 0.0
        %866 = vmatprep.mubr.f32.mxu0 0.0
        %867 = vmatmul.mubr.f32.gmra.mrb[0].mxu0 %v800
        %v868 = vpop.f32.mrb[0].mxu0
        %v869 = vadd.f32 0.0, %v868
        %v870 = vpop.f32.mrb[0].mxu0
        %871 = vdwg.mxu0
        %v873 = vsel %vm798, %v789, 0
        %875 = vmatprep.subr.mxu0 0.0
        %876 = vmatpush1.msra.mxu0 %v790
        %877 = vmatprep.subr.mxu0 0.0
        %878 = vmatpush1.msra.mxu0 %v791
        %879 = vmatprep.subr.mxu0 0.0
        %880 = vmatpush1.msra.mxu0 %v792
        %881 = vmatprep.subr.mxu0 0.0
        %882 = vmatpush1.msra.mxu0 %v793
        %883 = vmatprep.subr.mxu0 0.0
        %884 = vmatpush1.msra.mxu0 0.0
        %885 = vmatprep.subr.mxu0 0.0
        %886 = vmatpush1.msra.mxu0 0.0
        %887 = vmatprep.subr.mxu0 0.0
        %888 = vmatpush1.msra.mxu0 0.0
        %889 = vmatprep.subr.mxu0 0.0
        %890 = vmatpush1.msra.mxu0 0.0
        %891 = vmatprep.subr.mxu0 0.0
        %892 = vmatpush1.msra.mxu0 0.0
        %893 = vmatprep.subr.mxu0 0.0
        %894 = vmatpush1.msra.mxu0 0.0
        %895 = vmatprep.subr.mxu0 0.0
        %896 = vmatpush1.msra.mxu0 0.0
        %897 = vmatprep.subr.mxu0 0.0
        %898 = vmatpush1.msra.mxu0 0.0
        %899 = vmatprep.subr.mxu0 0.0
        %900 = vmatpush1.msra.mxu0 0.0
        %901 = vmatprep.subr.mxu0 0.0
        %902 = vmatpush1.msra.mxu0 0.0
        %903 = vmatprep.subr.mxu0 0.0
        %904 = vmatpush1.msra.mxu0 0.0
        %905 = vmatprep.subr.mxu0 0.0
        %906 = vmatpush1.msra.mxu0 0.0
        %907 = vmatprep.subr.mxu0 0.0
        %908 = vmatpush1.msra.mxu0 0.0
        %909 = vmatprep.subr.mxu0 0.0
        %910 = vmatpush1.msra.mxu0 0.0
        %911 = vmatprep.subr.mxu0 0.0
        %912 = vmatpush1.msra.mxu0 0.0
        %913 = vmatprep.subr.mxu0 0.0
        %914 = vmatpush1.msra.mxu0 0.0
        %915 = vmatprep.subr.mxu0 0.0
        %916 = vmatpush1.msra.mxu0 0.0
        %917 = vmatprep.subr.mxu0 0.0
        %918 = vmatpush1.msra.mxu0 0.0
        %919 = vmatprep.subr.mxu0 0.0
        %920 = vmatpush1.msra.mxu0 0.0
        %921 = vmatprep.subr.mxu0 0.0
        %922 = vmatpush1.msra.mxu0 0.0
        %923 = vmatprep.subr.mxu0 0.0
        %924 = vmatpush1.msra.mxu0 0.0
        %925 = vmatprep.subr.mxu0 0.0
        %926 = vmatpush1.msra.mxu0 0.0
        %927 = vmatprep.subr.mxu0 0.0
        %928 = vmatpush1.msra.mxu0 0.0
        %929 = vmatprep.subr.mxu0 0.0
        %930 = vmatpush1.msra.mxu0 0.0
        %931 = vmatprep.subr.mxu0 0.0
        %932 = vmatpush1.msra.mxu0 0.0
        %933 = vmatprep.subr.mxu0 0.0
        %934 = vmatpush1.msra.mxu0 0.0
        %935 = vmatprep.subr.mxu0 0.0
        %936 = vmatpush1.msra.mxu0 0.0
        %937 = vmatprep.subr.mxu0 0.0
        %938 = vmatpush1.msra.mxu0 0.0
        %939 = vmatprep.mubr.f32.mxu0 0.0
        %940 = vmatmul.mubr.f32.gmra.mrb[0].mxu0 %v873
        %v941 = vpop.f32.mrb[0].mxu0
        %v942 = vadd.f32 %v869, %v941
        %v943 = vpop.f32.mrb[0].mxu0
        %944 = vdwg.mxu0
        %v945 = vld [vmem:[%s8] sm:$0x1]
        %v947 = vlaneseq
        %v948 = vshrl.u32 %v947, 7
        %v949 = vsub.s32 0, %v948
        %v950 = vrot.slane %v945, %v949
        %v952 = vadd.f32 %v942, %v950
        %v953 = vmax.f32 %v952, 0.0
        %v954 = vadd.f32 %v953, %v787
        %v955 = vld [vmem:[#allocation11] sm:$0xff]
        %v956 = vld [vmem:[#allocation11 + $0x8] sm:$0xff]
        %v957 = vld [vmem:[#allocation11 + $0x10] sm:$0xff]
        %v958 = vld [vmem:[#allocation11 + $0x18] sm:$0xff]
        %v959 = vld [vmem:[%s10] sm:$0x1]
        %v961 = vlaneseq
        %v962 = vshrl.u32 %v961, 7
        %v963 = vsub.s32 0, %v962
        %v964 = vrot.slane %v959, %v963
        %v967 = vsel %vm798, %v954, 0
        %969 = vmatprep.subr.mxu0 0.0
        %970 = vmatpush1.msra.mxu0 %v955
        %971 = vmatprep.subr.mxu0 0.0
        %972 = vmatpush1.msra.mxu0 %v956
        %973 = vmatprep.subr.mxu0 0.0
        %974 = vmatpush1.msra.mxu0 %v957
        %975 = vmatprep.subr.mxu0 0.0
        %976 = vmatpush1.msra.mxu0 %v958
        %977 = vmatprep.subr.mxu0 0.0
        %978 = vmatpush1.msra.mxu0 0.0
        %979 = vmatprep.subr.mxu0 0.0
        %980 = vmatpush1.msra.mxu0 0.0
        %981 = vmatprep.subr.mxu0 0.0
        %982 = vmatpush1.msra.mxu0 0.0
        %983 = vmatprep.subr.mxu0 0.0
        %984 = vmatpush1.msra.mxu0 0.0
        %985 = vmatprep.subr.mxu0 0.0
        %986 = vmatpush1.msra.mxu0 0.0
        %987 = vmatprep.subr.mxu0 0.0
        %988 = vmatpush1.msra.mxu0 0.0
        %989 = vmatprep.subr.mxu0 0.0
        %990 = vmatpush1.msra.mxu0 0.0
        %991 = vmatprep.subr.mxu0 0.0
        %992 = vmatpush1.msra.mxu0 0.0
        %993 = vmatprep.subr.mxu0 0.0
        %994 = vmatpush1.msra.mxu0 0.0
        %995 = vmatprep.subr.mxu0 0.0
        %996 = vmatpush1.msra.mxu0 0.0
        %997 = vmatprep.subr.mxu0 0.0
        %998 = vmatpush1.msra.mxu0 0.0
        %999 = vmatprep.subr.mxu0 0.0
        %1000 = vmatpush1.msra.mxu0 0.0
        %1001 = vmatprep.subr.mxu0 0.0
        %1002 = vmatpush1.msra.mxu0 0.0
        %1003 = vmatprep.subr.mxu0 0.0
        %1004 = vmatpush1.msra.mxu0 0.0
        %1005 = vmatprep.subr.mxu0 0.0
        %1006 = vmatpush1.msra.mxu0 0.0
        %1007 = vmatprep.subr.mxu0 0.0
        %1008 = vmatpush1.msra.mxu0 0.0
        %1009 = vmatprep.subr.mxu0 0.0
        %1010 = vmatpush1.msra.mxu0 0.0
        %1011 = vmatprep.subr.mxu0 0.0
        %1012 = vmatpush1.msra.mxu0 0.0
        %1013 = vmatprep.subr.mxu0 0.0
        %1014 = vmatpush1.msra.mxu0 0.0
        %1015 = vmatprep.subr.mxu0 0.0
        %1016 = vmatpush1.msra.mxu0 0.0
        %1017 = vmatprep.subr.mxu0 0.0
        %1018 = vmatpush1.msra.mxu0 0.0
        %1019 = vmatprep.subr.mxu0 0.0
        %1020 = vmatpush1.msra.mxu0 0.0
        %1021 = vmatprep.subr.mxu0 0.0
        %1022 = vmatpush1.msra.mxu0 0.0
        %1023 = vmatprep.subr.mxu0 0.0
        %1024 = vmatpush1.msra.mxu0 0.0
        %1025 = vmatprep.subr.mxu0 0.0
        %1026 = vmatpush1.msra.mxu0 0.0
        %1027 = vmatprep.subr.mxu0 0.0
        %1028 = vmatpush1.msra.mxu0 0.0
        %1029 = vmatprep.subr.mxu0 0.0
        %1030 = vmatpush1.msra.mxu0 0.0
        %1031 = vmatprep.subr.mxu0 0.0
        %1032 = vmatpush1.msra.mxu0 0.0
        %1033 = vmatprep.mubr.f32.mxu0 0.0
        %1034 = vmatmul.mubr.f32.gmra.mrb[0].mxu0 %v967
        %v1035 = vpop.f32.mrb[0].mxu0
        %v1036 = vadd.f32 %v964, %v1035
        %v1037 = vpop.f32.mrb[0].mxu0
        %1038 = vdwg.mxu0
        %v1039 = vmax.f32 %v1036, 0.0
        %v1040 = vld [vmem:[%s614] sm:$0xff]
        %v1041 = vld [vmem:[#allocation13] sm:$0xff]
        %v1042 = vld [vmem:[#allocation13 + $0x8] sm:$0xff]
        %v1043 = vld [vmem:[#allocation13 + $0x10] sm:$0xff]
        %v1044 = vld [vmem:[#allocation13 + $0x18] sm:$0xff]
        %v1045 = vld [vmem:[#allocation14] sm:$0xff]
        %v1046 = vld [vmem:[#allocation14 + $0x8] sm:$0xff]
        %v1047 = vld [vmem:[#allocation14 + $0x10] sm:$0xff]
        %v1048 = vld [vmem:[#allocation14 + $0x18] sm:$0xff]
        %v1050 = vsel %vm798, %v1039, 0
        %1052 = vmatprep.subr.mxu0 0.0
        %1053 = vmatpush1.msra.mxu0 %v1045
        %1054 = vmatprep.subr.mxu0 0.0
        %1055 = vmatpush1.msra.mxu0 %v1046
        %1056 = vmatprep.subr.mxu0 0.0
        %1057 = vmatpush1.msra.mxu0 %v1047
        %1058 = vmatprep.subr.mxu0 0.0
        %1059 = vmatpush1.msra.mxu0 %v1048
        %1060 = vmatprep.subr.mxu0 0.0
        %1061 = vmatpush1.msra.mxu0 0.0
        %1062 = vmatprep.subr.mxu0 0.0
        %1063 = vmatpush1.msra.mxu0 0.0
        %1064 = vmatprep.subr.mxu0 0.0
        %1065 = vmatpush1.msra.mxu0 0.0
        %1066 = vmatprep.subr.mxu0 0.0
        %1067 = vmatpush1.msra.mxu0 0.0
        %1068 = vmatprep.subr.mxu0 0.0
        %1069 = vmatpush1.msra.mxu0 0.0
        %1070 = vmatprep.subr.mxu0 0.0
        %1071 = vmatpush1.msra.mxu0 0.0
        %1072 = vmatprep.subr.mxu0 0.0
        %1073 = vmatpush1.msra.mxu0 0.0
        %1074 = vmatprep.subr.mxu0 0.0
        %1075 = vmatpush1.msra.mxu0 0.0
        %1076 = vmatprep.subr.mxu0 0.0
        %1077 = vmatpush1.msra.mxu0 0.0
        %1078 = vmatprep.subr.mxu0 0.0
        %1079 = vmatpush1.msra.mxu0 0.0
        %1080 = vmatprep.subr.mxu0 0.0
        %1081 = vmatpush1.msra.mxu0 0.0
        %1082 = vmatprep.subr.mxu0 0.0
        %1083 = vmatpush1.msra.mxu0 0.0
        %1084 = vmatprep.subr.mxu0 0.0
        %1085 = vmatpush1.msra.mxu0 0.0
        %1086 = vmatprep.subr.mxu0 0.0
        %1087 = vmatpush1.msra.mxu0 0.0
        %1088 = vmatprep.subr.mxu0 0.0
        %1089 = vmatpush1.msra.mxu0 0.0
        %1090 = vmatprep.subr.mxu0 0.0
        %1091 = vmatpush1.msra.mxu0 0.0
        %1092 = vmatprep.subr.mxu0 0.0
        %1093 = vmatpush1.msra.mxu0 0.0
        %1094 = vmatprep.subr.mxu0 0.0
        %1095 = vmatpush1.msra.mxu0 0.0
        %1096 = vmatprep.subr.mxu0 0.0
        %1097 = vmatpush1.msra.mxu0 0.0
        %1098 = vmatprep.subr.mxu0 0.0
        %1099 = vmatpush1.msra.mxu0 0.0
        %1100 = vmatprep.subr.mxu0 0.0
        %1101 = vmatpush1.msra.mxu0 0.0
        %1102 = vmatprep.subr.mxu0 0.0
        %1103 = vmatpush1.msra.mxu0 0.0
        %1104 = vmatprep.subr.mxu0 0.0
        %1105 = vmatpush1.msra.mxu0 0.0
        %1106 = vmatprep.subr.mxu0 0.0
        %1107 = vmatpush1.msra.mxu0 0.0
        %1108 = vmatprep.subr.mxu0 0.0
        %1109 = vmatpush1.msra.mxu0 0.0
        %1110 = vmatprep.subr.mxu0 0.0
        %1111 = vmatpush1.msra.mxu0 0.0
        %1112 = vmatprep.subr.mxu0 0.0
        %1113 = vmatpush1.msra.mxu0 0.0
        %1114 = vmatprep.subr.mxu0 0.0
        %1115 = vmatpush1.msra.mxu0 0.0
        %1116 = vmatprep.mubr.f32.mxu0 0.0
        %1117 = vmatmul.mubr.f32.gmra.mrb[0].mxu0 %v1050
        %v1118 = vpop.f32.mrb[0].mxu0
        %v1119 = vadd.f32 0.0, %v1118
        %v1120 = vpop.f32.mrb[0].mxu0
        %1121 = vdwg.mxu0
        %v1123 = vsel %vm798, %v1040, 0
        %1125 = vmatprep.subr.mxu0 0.0
        %1126 = vmatpush1.msra.mxu0 %v1041
        %1127 = vmatprep.subr.mxu0 0.0
        %1128 = vmatpush1.msra.mxu0 %v1042
        %1129 = vmatprep.subr.mxu0 0.0
        %1130 = vmatpush1.msra.mxu0 %v1043
        %1131 = vmatprep.subr.mxu0 0.0
        %1132 = vmatpush1.msra.mxu0 %v1044
        %1133 = vmatprep.subr.mxu0 0.0
        %1134 = vmatpush1.msra.mxu0 0.0
        %1135 = vmatprep.subr.mxu0 0.0
        %1136 = vmatpush1.msra.mxu0 0.0
        %1137 = vmatprep.subr.mxu0 0.0
        %1138 = vmatpush1.msra.mxu0 0.0
        %1139 = vmatprep.subr.mxu0 0.0
        %1140 = vmatpush1.msra.mxu0 0.0
        %1141 = vmatprep.subr.mxu0 0.0
        %1142 = vmatpush1.msra.mxu0 0.0
        %1143 = vmatprep.subr.mxu0 0.0
        %1144 = vmatpush1.msra.mxu0 0.0
        %1145 = vmatprep.subr.mxu0 0.0
        %1146 = vmatpush1.msra.mxu0 0.0
        %1147 = vmatprep.subr.mxu0 0.0
        %1148 = vmatpush1.msra.mxu0 0.0
        %1149 = vmatprep.subr.mxu0 0.0
        %1150 = vmatpush1.msra.mxu0 0.0
        %1151 = vmatprep.subr.mxu0 0.0
        %1152 = vmatpush1.msra.mxu0 0.0
        %1153 = vmatprep.subr.mxu0 0.0
        %1154 = vmatpush1.msra.mxu0 0.0
        %1155 = vmatprep.subr.mxu0 0.0
        %1156 = vmatpush1.msra.mxu0 0.0
        %1157 = vmatprep.subr.mxu0 0.0
        %1158 = vmatpush1.msra.mxu0 0.0
        %1159 = vmatprep.subr.mxu0 0.0
        %1160 = vmatpush1.msra.mxu0 0.0
        %1161 = vmatprep.subr.mxu0 0.0
        %1162 = vmatpush1.msra.mxu0 0.0
        %1163 = vmatprep.subr.mxu0 0.0
        %1164 = vmatpush1.msra.mxu0 0.0
        %1165 = vmatprep.subr.mxu0 0.0
        %1166 = vmatpush1.msra.mxu0 0.0
        %1167 = vmatprep.subr.mxu0 0.0
        %1168 = vmatpush1.msra.mxu0 0.0
        %1169 = vmatprep.subr.mxu0 0.0
        %1170 = vmatpush1.msra.mxu0 0.0
        %1171 = vmatprep.subr.mxu0 0.0
        %1172 = vmatpush1.msra.mxu0 0.0
        %1173 = vmatprep.subr.mxu0 0.0
        %1174 = vmatpush1.msra.mxu0 0.0
        %1175 = vmatprep.subr.mxu0 0.0
        %1176 = vmatpush1.msra.mxu0 0.0
        %1177 = vmatprep.subr.mxu0 0.0
        %1178 = vmatpush1.msra.mxu0 0.0
        %1179 = vmatprep.subr.mxu0 0.0
        %1180 = vmatpush1.msra.mxu0 0.0
        %1181 = vmatprep.subr.mxu0 0.0
        %1182 = vmatpush1.msra.mxu0 0.0
        %1183 = vmatprep.subr.mxu0 0.0
        %1184 = vmatpush1.msra.mxu0 0.0
        %1185 = vmatprep.subr.mxu0 0.0
        %1186 = vmatpush1.msra.mxu0 0.0
        %1187 = vmatprep.subr.mxu0 0.0
        %1188 = vmatpush1.msra.mxu0 0.0
        %1189 = vmatprep.mubr.f32.mxu0 0.0
        %1190 = vmatmul.mubr.f32.gmra.mrb[0].mxu0 %v1123
        %v1191 = vpop.f32.mrb[0].mxu0
        %v1192 = vadd.f32 %v1119, %v1191
        %v1193 = vpop.f32.mrb[0].mxu0
        %1194 = vdwg.mxu0
        %v1195 = vld [vmem:[%s13] sm:$0x1]
        %v1197 = vlaneseq
        %v1198 = vshrl.u32 %v1197, 7
        %v1199 = vsub.s32 0, %v1198
        %v1200 = vrot.slane %v1195, %v1199
        %v1202 = vadd.f32 %v1192, %v1200
        %v1203 = vmax.f32 %v1202, 0.0
        %1205 = vrot.lane.b32.xlu0 %v787, 96
        %v1206 = vpop.permute.xlu0 %1205
        %v1208 = vadd.f32 %v1203, %v1206
        %v1209 = vld [vmem:[%s14] sm:$0xff]
        %v1210 = vld [vmem:[%s14 + $0x8] sm:$0xff]
        %v1211 = vld [vmem:[%s14 + $0x10] sm:$0xff]
        %v1212 = vld [vmem:[%s14 + $0x18] sm:$0xff]
        %v1213 = vld [vmem:[%s15] sm:$0x1]
        %v1215 = vlaneseq
        %v1216 = vshrl.u32 %v1215, 7
        %v1217 = vsub.s32 0, %v1216
        %v1218 = vrot.slane %v1213, %v1217
        %v1221 = vsel %vm798, %v1208, 0
        %1223 = vmatprep.subr.mxu0 0.0
        %1224 = vmatpush1.msra.mxu0 %v1209
        %1225 = vmatprep.subr.mxu0 0.0
        %1226 = vmatpush1.msra.mxu0 %v1210
        %1227 = vmatprep.subr.mxu0 0.0
        %1228 = vmatpush1.msra.mxu0 %v1211
        %1229 = vmatprep.subr.mxu0 0.0
        %1230 = vmatpush1.msra.mxu0 %v1212
        %1231 = vmatprep.subr.mxu0 0.0
        %1232 = vmatpush1.msra.mxu0 0.0
        %1233 = vmatprep.subr.mxu0 0.0
        %1234 = vmatpush1.msra.mxu0 0.0
        %1235 = vmatprep.subr.mxu0 0.0
        %1236 = vmatpush1.msra.mxu0 0.0
        %1237 = vmatprep.subr.mxu0 0.0
        %1238 = vmatpush1.msra.mxu0 0.0
        %1239 = vmatprep.subr.mxu0 0.0
        %1240 = vmatpush1.msra.mxu0 0.0
        %1241 = vmatprep.subr.mxu0 0.0
        %1242 = vmatpush1.msra.mxu0 0.0
        %1243 = vmatprep.subr.mxu0 0.0
        %1244 = vmatpush1.msra.mxu0 0.0
        %1245 = vmatprep.subr.mxu0 0.0
        %1246 = vmatpush1.msra.mxu0 0.0
        %1247 = vmatprep.subr.mxu0 0.0
        %1248 = vmatpush1.msra.mxu0 0.0
        %1249 = vmatprep.subr.mxu0 0.0
        %1250 = vmatpush1.msra.mxu0 0.0
        %1251 = vmatprep.subr.mxu0 0.0
        %1252 = vmatpush1.msra.mxu0 0.0
        %1253 = vmatprep.subr.mxu0 0.0
        %1254 = vmatpush1.msra.mxu0 0.0
        %1255 = vmatprep.subr.mxu0 0.0
        %1256 = vmatpush1.msra.mxu0 0.0
        %1257 = vmatprep.subr.mxu0 0.0
        %1258 = vmatpush1.msra.mxu0 0.0
        %1259 = vmatprep.subr.mxu0 0.0
        %1260 = vmatpush1.msra.mxu0 0.0
        %1261 = vmatprep.subr.mxu0 0.0
        %1262 = vmatpush1.msra.mxu0 0.0
        %1263 = vmatprep.subr.mxu0 0.0
        %1264 = vmatpush1.msra.mxu0 0.0
        %1265 = vmatprep.subr.mxu0 0.0
        %1266 = vmatpush1.msra.mxu0 0.0
        %1267 = vmatprep.subr.mxu0 0.0
        %1268 = vmatpush1.msra.mxu0 0.0
        %1269 = vmatprep.subr.mxu0 0.0
        %1270 = vmatpush1.msra.mxu0 0.0
        %1271 = vmatprep.subr.mxu0 0.0
        %1272 = vmatpush1.msra.mxu0 0.0
        %1273 = vmatprep.subr.mxu0 0.0
        %1274 = vmatpush1.msra.mxu0 0.0
        %1275 = vmatprep.subr.mxu0 0.0
        %1276 = vmatpush1.msra.mxu0 0.0
        %1277 = vmatprep.subr.mxu0 0.0
        %1278 = vmatpush1.msra.mxu0 0.0
        %1279 = vmatprep.subr.mxu0 0.0
        %1280 = vmatpush1.msra.mxu0 0.0
        %1281 = vmatprep.subr.mxu0 0.0
        %1282 = vmatpush1.msra.mxu0 0.0
        %1283 = vmatprep.subr.mxu0 0.0
        %1284 = vmatpush1.msra.mxu0 0.0
        %1285 = vmatprep.subr.mxu0 0.0
        %1286 = vmatpush1.msra.mxu0 0.0
        %1287 = vmatprep.mubr.f32.mxu0 0.0
        %1288 = vmatmul.mubr.f32.gmra.mrb[0].mxu0 %v1221
        %v1289 = vpop.f32.mrb[0].mxu0
        %v1290 = vadd.f32 %v1218, %v1289
        %v1291 = vpop.f32.mrb[0].mxu0
        %1292 = vdwg.mxu0
        %v1293 = vmax.f32 %v1290, 0.0
        %1294 = vst.msk [vmem:[%s702] sm:$0xff] %vm713, %v1293
        %s1295 = sand.u32 %s405, 1
        %s1296 = scalar_lea.sflag [#allocation4], %s1295
        %s1297 = sand.u32 %s405, 1
        %s1298 = smul.addr %s1297, 8
        %s1299 = scalar_lea.vmem [#allocation16], %s1298
        // Predicated region
        $region117: #{tpu_custom_call.1} parent=83 // pred_check
          %p1300 = pneg %p415
        $region118: #{tpu_custom_call.1} parent=83 // pred_check_branch
          %1302 = sbr.rel (%p1300) target = $region120
        $region119: #{tpu_custom_call.1} parent=83 // pred_region
          %s1304 = ssub.s32 128, 128
          %1305 = vsyncadd %s1296, %s1304
          %s1306 = smul.addr %s41, 128
          %s1307 = scalar_lea.hbm %s16, %s1306
          %s1309 = sshll.u32 %s1299, 4
          %s1310 = int_to_ptr.vmem [resolvable:$true] %s1309
          %1312 = dma.vmem_to_hbm [thread:$0]  %s1310, 128, %s1307, %s1296
        $region120: #{tpu_custom_call.1} parent=83 // pred_fallthru
          _
      $region84: #{tpu_custom_call.1} parent=5 // pred_fallthru
        _
      %p1313 = scmp.le.s32.totalorder 2, %s36
      // Predicated region
      $region121: #{tpu_custom_call.1} parent=5 // pred_check
        %p1314 = pneg %p1313
      $region122: #{tpu_custom_call.1} parent=5 // pred_check_branch
        %1316 = sbr.rel (%p1314) target = $region124
      $region123: #{tpu_custom_call.1} parent=5 // pred_region
        %s1317 = ssub.s32 %s36, 2
        // Predicated region
        $region125: #{tpu_custom_call.1} parent=123 // pred_check
          %p1318 = pneg %p421
        $region126: #{tpu_custom_call.1} parent=123 // pred_check_branch
          %1320 = sbr.rel (%p1318) target = $region128
        $region127: #{tpu_custom_call.1} parent=123 // pred_region
          %s1321 = sand.u32 %s406, 1
          %s1322 = scalar_lea.sflag [#allocation4], %s1321
          %s1323 = sand.u32 %s406, 1
          %s1324 = smul.addr %s1323, 8
          %s1325 = scalar_lea.vmem [#allocation16], %s1324
          %1326 = dma.done %s1322, 128
        $region128: #{tpu_custom_call.1} parent=123 // pred_fallthru
          _
      $region124: #{tpu_custom_call.1} parent=5 // pred_fallthru
        _
    $region6: #{tpu_custom_call.1} parent=1 // loop_footer
      %s40 = sadd.s32 1, %s36
    $region7: #{tpu_custom_call.1} parent=1 // loop_footer_branch
      %35 = sbr.rel target = $region3
    $region8: #{tpu_custom_call.1} parent=1 // loop_exit
      _
    %1327 = vsyncpa [#allocation3], 1
    %s1328 = scalar_lea.sflag [#allocation3], 1
    %1329 = vsyncpa %s1328, 1
    %1330 = vsyncpa [#allocation6], 1
    %s1331 = scalar_lea.sflag [#allocation6], 1
    %1332 = vsyncpa %s1331, 1
    %1333 = vsyncpa [#allocation9], 1
    %s1334 = scalar_lea.sflag [#allocation9], 1
    %1335 = vsyncpa %s1334, 1
    %1336 = vsyncpa [#allocation12], 1
    %1337 = vsyncpa [#allocation15], 1
    %1338 = vsyncpa [#allocation4], 1
    %s1339 = scalar_lea.sflag [#allocation4], 1
    %1340 = vsyncpa %s1339, 1

</llo_original>
